<compile_context>
chip_gen: v6e
topology: v6e:2x2x1
jax: 0.10.0
libtpu: 0.0.40
codegen_flags: <defaults>
</compile_context>

<pallas_src>
import jax
import jax.numpy as jnp
from jax.experimental import pallas as pl
from jax.experimental.pallas import tpu as pltpu

N_ITER = 3
NPOSE, NSHAPE, NCAM = 144, 10, 3
NSTATE = NPOSE + NSHAPE + NCAM        # 157
NSTATE_PAD = 256                      # lane-dense padded state width


def _round_up(x, m):
    return (x + m - 1) // m * m


def _vmem_limit_bytes(feat, hidden, bm):
    """Actual requirement (bf16 weights, f32 biases/state, double-buffered IO)
    with headroom, capped at 32 MiB so it is valid on v7x (64 MiB physical)."""
    w_bytes = 2 * (feat * hidden + NSTATE_PAD * hidden
                   + hidden * hidden + hidden * NSTATE_PAD)
    b_bytes = 4 * (2 * hidden + 2 * NSTATE_PAD)
    io_bytes = 2 * bm * feat + 4 * bm * NSTATE_PAD
    act_bytes = 4 * bm * (2 * hidden + 2 * NSTATE_PAD)
    need = 2 * (w_bytes + b_bytes + io_bytes) + act_bytes + (4 << 20)
    return int(min(max(need, 8 << 20), 32 << 20))


def regressor_kernel(x_ref, s0_ref,
                     w1x_ref, w1s_ref, b1_ref,
                     w2_ref, b2_ref,
                     wdec_ref, bdec_ref,
                     out_ref):
    """One batch-block of the iterative-error-feedback regressor.

    Weights are bf16 (fed straight to the MXU, f32 accumulation); the running
    [pose|shape|cam] state, bias adds and residual updates stay f32.
    """
    bm = x_ref.shape[0]

    x = x_ref[...]                        # (bm, FEAT)      bf16
    w1x = w1x_ref[...]                    # (FEAT, H)       bf16
    w1s = w1s_ref[...]                    # (256, H)        bf16 (rows 157..255 zero)
    w2 = w2_ref[...]                      # (H, H)          bf16
    wdec = wdec_ref[...]                  # (H, 256)        bf16 (cols 157..255 zero)
    b1 = b1_ref[...]                      # (1, H)          f32
    hidden = w2.shape[1]

    # Hoist broadcasts out of the unrolled loop (JAX does not CSE broadcast_in_dim).
    b2b = jnp.broadcast_to(b2_ref[...], (bm, hidden))           # (bm, H)   f32
    bdecb = jnp.broadcast_to(bdec_ref[...], (bm, NSTATE_PAD))   # (bm, 256) f32

    # Image-feature half of fc1 is loop-invariant: one big matmul, done once.
    xw = jnp.dot(x, w1x, preferred_element_type=jnp.float32) + b1   # (bm, H) f32

    # Broadcast the mean-parameter initial state once.
    state = jnp.broadcast_to(s0_ref[...].astype(jnp.float32), (bm, NSTATE_PAD))

    # n_iter is static (3), so a Python loop unrolls cleanly.
    for _ in range(N_ITER):
        # fc1 on concat([x, state]) == xw + state @ w1_state
        h = xw + jnp.dot(state.astype(jnp.bfloat16), w1s,
                         preferred_element_type=jnp.float32)
        # drop1: identity (eval mode)
        h = jnp.dot(h.astype(jnp.bfloat16), w2,
                    preferred_element_type=jnp.float32) + b2b
        # drop2: identity (eval mode)
        # Fused decpose/decshape/deccam + residual update, lane-dense 256 wide.
        state = state + jnp.dot(h.astype(jnp.bfloat16), wdec,
                                preferred_element_type=jnp.float32) + bdecb

    out_ref[...] = state


def run_regressor(f_img, params, *, batch_block=256):
    """One pallas_call: 1-D grid over (padded) batch, weights resident in VMEM."""
    B, feat = f_img.shape
    hidden = params["w2"].shape[0]

    bm = min(batch_block, _round_up(B, 8))   # at least a full sublane of rows
    Bp = _round_up(B, bm)

    x = f_img.astype(jnp.bfloat16)
    if Bp != B:
        x = jnp.pad(x, ((0, Bp - B), (0, 0)))

    const = lambda i: (0, 0)  # resident operands: same block every grid step
    in_specs = [
        pl.BlockSpec((bm, feat), lambda i: (i, 0)),     # f_img batch block
        pl.BlockSpec((1, NSTATE_PAD), const),           # init [pose|shape|cam] (padded)
        pl.BlockSpec((feat, hidden), const),            # w1 (image-feature split)
        pl.BlockSpec((NSTATE_PAD, hidden), const),      # w1 (state split, padded rows)
        pl.BlockSpec((1, hidden), const),               # b1
        pl.BlockSpec((hidden, hidden), const),          # w2
        pl.BlockSpec((1, hidden), const),               # b2
        pl.BlockSpec((hidden, NSTATE_PAD), const),      # fused decoder weight
        pl.BlockSpec((1, NSTATE_PAD), const),           # fused decoder bias
    ]
    out_spec = pl.BlockSpec((bm, NSTATE_PAD), lambda i: (i, 0))

    state = pl.pallas_call(
        regressor_kernel,
        out_shape=jax.ShapeDtypeStruct((Bp, NSTATE_PAD), jnp.float32),
        grid=(Bp // bm,),
        in_specs=in_specs,
        out_specs=out_spec,
        compiler_params=pltpu.CompilerParams(
            dimension_semantics=("parallel",),
            vmem_limit_bytes=_vmem_limit_bytes(feat, hidden, bm)),
    )(x, params["init_state"],
      params["w1x"], params["w1_state"], params["b1"],
      params["w2"], params["b2"],
      params["w_dec"], params["b_dec"])

    state = state[:B]
    pred_pose = state[:, :NPOSE]
    pred_shape = state[:, NPOSE:NPOSE + NSHAPE]
    pred_cam = state[:, NPOSE + NSHAPE:NSTATE]
    return pred_pose, pred_shape, pred_cam


def rot6d_to_rotmat(x):
    """Gram-Schmidt 6D-rotation -> rotation matrices (plain-JAX glue; tiny)."""
    x = x.reshape(-1, 3, 2)
    a1 = x[:, :, 0]
    a2 = x[:, :, 1]
    b1 = a1 / jnp.linalg.norm(a1, axis=1, keepdims=True)
    b2 = a2 - jnp.sum(b1 * a2, axis=1, keepdims=True) * b1
    b2 = b2 / jnp.linalg.norm(b2, axis=1, keepdims=True)
    b3 = jnp.cross(b1, b2)
    return jnp.stack([b1, b2, b3], axis=-1)


def make_params(key, feat_dim, hidden_dim):
    """Deterministic synthetic weights (shapes follow the SPIN Regressor),
    packed into the fused/padded layout used by the kernel."""
    keys = jax.random.split(key, 10)
    scale = 0.02

    def lin(k, fan_in, fan_out):
        return scale * jax.random.normal(k, (fan_in, fan_out), dtype=jnp.float32)

    # fc1 weight split along input: [image features | pose | shape | cam],
    # state half padded from 157 -> 256 rows with zeros.
    w1_state = jnp.zeros((NSTATE_PAD, hidden_dim), jnp.float32)
    w1_state = w1_state.at[:NSTATE].set(lin(keys[1], NSTATE, hidden_dim))

    # decpose / decshape / deccam fused column-wise, padded to 256 columns.
    w_dec = jnp.zeros((hidden_dim, NSTATE_PAD), jnp.float32)
    w_dec = w_dec.at[:, :NPOSE].set(lin(keys[2], hidden_dim, NPOSE))
    w_dec = w_dec.at[:, NPOSE:NPOSE + NSHAPE].set(lin(keys[3], hidden_dim, NSHAPE))
    w_dec = w_dec.at[:, NPOSE + NSHAPE:NSTATE].set(lin(keys[4], hidden_dim, NCAM))

    # mean-parameter initial estimates, packed [pose | shape | cam | zeros].
    init_state = jnp.zeros((1, NSTATE_PAD), jnp.float32)
    init_state = init_state.at[:, :NPOSE].set(
        0.1 * jax.random.normal(keys[5], (1, NPOSE), dtype=jnp.float32))
    init_state = init_state.at[:, NPOSE:NPOSE + NSHAPE].set(
        0.1 * jax.random.normal(keys[6], (1, NSHAPE), dtype=jnp.float32))
    init_state = init_state.at[:, NPOSE + NSHAPE:NSTATE].set(
        jnp.array([[0.9, 0.0, 0.0]], jnp.float32))

    return {
        "w1x": lin(keys[0], feat_dim, hidden_dim).astype(jnp.bfloat16),
        "w1_state": w1_state.astype(jnp.bfloat16),
        "b1": jnp.zeros((1, hidden_dim), jnp.float32),
        "w2": lin(keys[7], hidden_dim, hidden_dim).astype(jnp.bfloat16),
        "b2": jnp.zeros((1, hidden_dim), jnp.float32),
        "w_dec": w_dec.astype(jnp.bfloat16),
        "b_dec": jnp.zeros((1, NSTATE_PAD), jnp.float32),  # padded tail stays zero
        "init_state": init_state,
    }


def model_forward(f_img, params):
    pred_pose6d, pred_shape, pred_cam = run_regressor(f_img, params)
    pred_rotmat = rot6d_to_rotmat(pred_pose6d).reshape(f_img.shape[0], 24, 3, 3)
    # TODO(synk): SMPL body-model forward (vertices / 3D joints / projection)
    # needs the SMPL template data (J_regressor, shapedirs, ...) which cannot be
    # synthesized faithfully here.
    return pred_rotmat, pred_shape, pred_cam


if __name__ == "__main__":
    key = jax.random.PRNGKey(0)
    k_in, k_par = jax.random.split(key)

    # Small shapes: batch=2, feature dim 512 (SPIN uses 2048), hidden 256 (SPIN uses 1024).
    B, FEAT, HIDDEN = 2, 512, 256
    f_img = jax.random.normal(k_in, (B, FEAT), dtype=jnp.float32)
    params = make_params(k_par, FEAT, HIDDEN)

    pred_rotmat, pred_shape, pred_cam = model_forward(f_img, params)
    jax.block_until_ready((pred_rotmat, pred_shape, pred_cam))

    assert pred_rotmat.shape == (B, 24, 3, 3)
    assert pred_shape.shape == (B, 10)
    assert pred_cam.shape == (B, 3)
    print("KERNEL_OK")
</pallas_src>

<mosaic_0001>
module attributes {stable_mosaic.version = 11 : i64} {
  func.func @regressor_kernel(%arg0: i32, %arg1: memref<8x512xbf16, #tpu.memory_space<vmem>>, %arg2: memref<1x256xf32, #tpu.memory_space<vmem>>, %arg3: memref<512x256xbf16, #tpu.memory_space<vmem>>, %arg4: memref<256x256xbf16, #tpu.memory_space<vmem>>, %arg5: memref<1x256xf32, #tpu.memory_space<vmem>>, %arg6: memref<256x256xbf16, #tpu.memory_space<vmem>>, %arg7: memref<1x256xf32, #tpu.memory_space<vmem>>, %arg8: memref<256x256xbf16, #tpu.memory_space<vmem>>, %arg9: memref<1x256xf32, #tpu.memory_space<vmem>>, %arg10: memref<8x256xf32, #tpu.memory_space<vmem>>) attributes {dimension_semantics = [#tpu.dimension_semantics<parallel>], iteration_bounds = array<i64: 1>, scalar_prefetch = 0 : i64, scratch_operands = 0 : i64, tpu.core_type = #tpu.core_type<tc>, window_params = [{transform_indices = @transform_0, window_bounds = array<i64: 8, 512>}, {pipeline_mode = #tpu.pipeline_mode<synchronous>, transform_indices = @transform_1, window_bounds = array<i64: 1, 256>}, {pipeline_mode = #tpu.pipeline_mode<synchronous>, transform_indices = @transform_2, window_bounds = array<i64: 512, 256>}, {pipeline_mode = #tpu.pipeline_mode<synchronous>, transform_indices = @transform_3, window_bounds = array<i64: 256, 256>}, {pipeline_mode = #tpu.pipeline_mode<synchronous>, transform_indices = @transform_4, window_bounds = array<i64: 1, 256>}, {pipeline_mode = #tpu.pipeline_mode<synchronous>, transform_indices = @transform_5, window_bounds = array<i64: 256, 256>}, {pipeline_mode = #tpu.pipeline_mode<synchronous>, transform_indices = @transform_6, window_bounds = array<i64: 1, 256>}, {pipeline_mode = #tpu.pipeline_mode<synchronous>, transform_indices = @transform_7, window_bounds = array<i64: 256, 256>}, {pipeline_mode = #tpu.pipeline_mode<synchronous>, transform_indices = @transform_8, window_bounds = array<i64: 1, 256>}, {transform_indices = @transform_9, window_bounds = array<i64: 8, 256>}]} {
    %c0 = arith.constant 0 : index
    %c0_0 = arith.constant 0 : index
    %0 = vector.load %arg1[%c0, %c0_0] : memref<8x512xbf16, #tpu.memory_space<vmem>>, vector<8x512xbf16>
    %c0_1 = arith.constant 0 : index
    %c0_2 = arith.constant 0 : index
    %1 = vector.load %arg3[%c0_1, %c0_2] : memref<512x256xbf16, #tpu.memory_space<vmem>>, vector<512x256xbf16>
    %c0_3 = arith.constant 0 : index
    %c0_4 = arith.constant 0 : index
    %2 = vector.load %arg4[%c0_3, %c0_4] : memref<256x256xbf16, #tpu.memory_space<vmem>>, vector<256x256xbf16>
    %c0_5 = arith.constant 0 : index
    %c0_6 = arith.constant 0 : index
    %3 = vector.load %arg6[%c0_5, %c0_6] : memref<256x256xbf16, #tpu.memory_space<vmem>>, vector<256x256xbf16>
    %c0_7 = arith.constant 0 : index
    %c0_8 = arith.constant 0 : index
    %4 = vector.load %arg8[%c0_7, %c0_8] : memref<256x256xbf16, #tpu.memory_space<vmem>>, vector<256x256xbf16>
    %c0_9 = arith.constant 0 : index
    %c0_10 = arith.constant 0 : index
    %5 = vector.load %arg5[%c0_9, %c0_10] : memref<1x256xf32, #tpu.memory_space<vmem>>, vector<1x256xf32>
    %c0_11 = arith.constant 0 : index
    %c0_12 = arith.constant 0 : index
    %6 = vector.load %arg7[%c0_11, %c0_12] : memref<1x256xf32, #tpu.memory_space<vmem>>, vector<1x256xf32>
    %7 = vector.shape_cast %6 : vector<1x256xf32> to vector<1x256xf32>
    %8 = vector.broadcast %7 : vector<1x256xf32> to vector<8x256xf32>
    %c0_13 = arith.constant 0 : index
    %c0_14 = arith.constant 0 : index
    %9 = vector.load %arg9[%c0_13, %c0_14] : memref<1x256xf32, #tpu.memory_space<vmem>>, vector<1x256xf32>
    %10 = vector.shape_cast %9 : vector<1x256xf32> to vector<1x256xf32>
    %11 = vector.broadcast %10 : vector<1x256xf32> to vector<8x256xf32>
    %cst = arith.constant dense<0.000000e+00> : vector<8x256xf32>
    %12 = tpu.matmul %0, %1, %cst {dimension_numbers = #tpu.dot_dimension_numbers<[1], [0], [0], [1], [0, 0, 1, 1], [], []>} : vector<8x512xbf16>, vector<512x256xbf16>, vector<8x256xf32> -> vector<8x256xf32>
    %13 = vector.broadcast %5 : vector<1x256xf32> to vector<8x256xf32>
    %14 = arith.addf %12, %13 : vector<8x256xf32>
    %c0_15 = arith.constant 0 : index
    %c0_16 = arith.constant 0 : index
    %15 = vector.load %arg2[%c0_15, %c0_16] : memref<1x256xf32, #tpu.memory_space<vmem>>, vector<1x256xf32>
    %16 = vector.shape_cast %15 : vector<1x256xf32> to vector<1x256xf32>
    %17 = vector.broadcast %16 : vector<1x256xf32> to vector<8x256xf32>
    %18 = arith.truncf %17 : vector<8x256xf32> to vector<8x256xbf16>
    %cst_17 = arith.constant dense<0.000000e+00> : vector<8x256xf32>
    %19 = tpu.matmul %18, %2, %cst_17 {dimension_numbers = #tpu.dot_dimension_numbers<[1], [0], [0], [1], [0, 0, 1, 1], [], []>} : vector<8x256xbf16>, vector<256x256xbf16>, vector<8x256xf32> -> vector<8x256xf32>
    %20 = arith.addf %14, %19 : vector<8x256xf32>
    %21 = arith.truncf %20 : vector<8x256xf32> to vector<8x256xbf16>
    %cst_18 = arith.constant dense<0.000000e+00> : vector<8x256xf32>
    %22 = tpu.matmul %21, %3, %cst_18 {dimension_numbers = #tpu.dot_dimension_numbers<[1], [0], [0], [1], [0, 0, 1, 1], [], []>} : vector<8x256xbf16>, vector<256x256xbf16>, vector<8x256xf32> -> vector<8x256xf32>
    %23 = arith.addf %22, %8 : vector<8x256xf32>
    %24 = arith.truncf %23 : vector<8x256xf32> to vector<8x256xbf16>
    %cst_19 = arith.constant dense<0.000000e+00> : vector<8x256xf32>
    %25 = tpu.matmul %24, %4, %cst_19 {dimension_numbers = #tpu.dot_dimension_numbers<[1], [0], [0], [1], [0, 0, 1, 1], [], []>} : vector<8x256xbf16>, vector<256x256xbf16>, vector<8x256xf32> -> vector<8x256xf32>
    %26 = arith.addf %17, %25 : vector<8x256xf32>
    %27 = arith.addf %26, %11 : vector<8x256xf32>
    %28 = arith.truncf %27 : vector<8x256xf32> to vector<8x256xbf16>
    %cst_20 = arith.constant dense<0.000000e+00> : vector<8x256xf32>
    %29 = tpu.matmul %28, %2, %cst_20 {dimension_numbers = #tpu.dot_dimension_numbers<[1], [0], [0], [1], [0, 0, 1, 1], [], []>} : vector<8x256xbf16>, vector<256x256xbf16>, vector<8x256xf32> -> vector<8x256xf32>
    %30 = arith.addf %14, %29 : vector<8x256xf32>
    %31 = arith.truncf %30 : vector<8x256xf32> to vector<8x256xbf16>
    %cst_21 = arith.constant dense<0.000000e+00> : vector<8x256xf32>
    %32 = tpu.matmul %31, %3, %cst_21 {dimension_numbers = #tpu.dot_dimension_numbers<[1], [0], [0], [1], [0, 0, 1, 1], [], []>} : vector<8x256xbf16>, vector<256x256xbf16>, vector<8x256xf32> -> vector<8x256xf32>
    %33 = arith.addf %32, %8 : vector<8x256xf32>
    %34 = arith.truncf %33 : vector<8x256xf32> to vector<8x256xbf16>
    %cst_22 = arith.constant dense<0.000000e+00> : vector<8x256xf32>
    %35 = tpu.matmul %34, %4, %cst_22 {dimension_numbers = #tpu.dot_dimension_numbers<[1], [0], [0], [1], [0, 0, 1, 1], [], []>} : vector<8x256xbf16>, vector<256x256xbf16>, vector<8x256xf32> -> vector<8x256xf32>
    %36 = arith.addf %27, %35 : vector<8x256xf32>
    %37 = arith.addf %36, %11 : vector<8x256xf32>
    %38 = arith.truncf %37 : vector<8x256xf32> to vector<8x256xbf16>
    %cst_23 = arith.constant dense<0.000000e+00> : vector<8x256xf32>
    %39 = tpu.matmul %38, %2, %cst_23 {dimension_numbers = #tpu.dot_dimension_numbers<[1], [0], [0], [1], [0, 0, 1, 1], [], []>} : vector<8x256xbf16>, vector<256x256xbf16>, vector<8x256xf32> -> vector<8x256xf32>
    %40 = arith.addf %14, %39 : vector<8x256xf32>
    %41 = arith.truncf %40 : vector<8x256xf32> to vector<8x256xbf16>
    %cst_24 = arith.constant dense<0.000000e+00> : vector<8x256xf32>
    %42 = tpu.matmul %41, %3, %cst_24 {dimension_numbers = #tpu.dot_dimension_numbers<[1], [0], [0], [1], [0, 0, 1, 1], [], []>} : vector<8x256xbf16>, vector<256x256xbf16>, vector<8x256xf32> -> vector<8x256xf32>
    %43 = arith.addf %42, %8 : vector<8x256xf32>
    %44 = arith.truncf %43 : vector<8x256xf32> to vector<8x256xbf16>
    %cst_25 = arith.constant dense<0.000000e+00> : vector<8x256xf32>
    %45 = tpu.matmul %44, %4, %cst_25 {dimension_numbers = #tpu.dot_dimension_numbers<[1], [0], [0], [1], [0, 0, 1, 1], [], []>} : vector<8x256xbf16>, vector<256x256xbf16>, vector<8x256xf32> -> vector<8x256xf32>
    %46 = arith.addf %37, %45 : vector<8x256xf32>
    %47 = arith.addf %46, %11 : vector<8x256xf32>
    %c0_26 = arith.constant 0 : index
    %c0_27 = arith.constant 0 : index
    %48 = vector.load %arg10[%c0_26, %c0_27] : memref<8x256xf32, #tpu.memory_space<vmem>>, vector<8x256xf32>
    tpu.vector_store %arg10[%c0_26, %c0_27], %47 {strides = array<i32>} : memref<8x256xf32, #tpu.memory_space<vmem>>, vector<8x256xf32>,
    return
  }
  func.func @transform_0(%arg0: i32) -> (i32, i32) {
    %c0_i32 = arith.constant 0 : i32
    %c0_i32_0 = arith.constant 0 : i32
    return %arg0, %c0_i32 : i32, i32
  }
  func.func @transform_1(%arg0: i32) -> (i32, i32) {
    %c0_i32 = arith.constant 0 : i32
    %c0_i32_0 = arith.constant 0 : i32
    %c0_i32_1 = arith.constant 0 : i32
    return %c0_i32, %c0_i32_0 : i32, i32
  }
  func.func @transform_2(%arg0: i32) -> (i32, i32) {
    %c0_i32 = arith.constant 0 : i32
    %c0_i32_0 = arith.constant 0 : i32
    %c0_i32_1 = arith.constant 0 : i32
    return %c0_i32, %c0_i32_0 : i32, i32
  }
  func.func @transform_3(%arg0: i32) -> (i32, i32) {
    %c0_i32 = arith.constant 0 : i32
    %c0_i32_0 = arith.constant 0 : i32
    %c0_i32_1 = arith.constant 0 : i32
    return %c0_i32, %c0_i32_0 : i32, i32
  }
  func.func @transform_4(%arg0: i32) -> (i32, i32) {
    %c0_i32 = arith.constant 0 : i32
    %c0_i32_0 = arith.constant 0 : i32
    %c0_i32_1 = arith.constant 0 : i32
    return %c0_i32, %c0_i32_0 : i32, i32
  }
  func.func @transform_5(%arg0: i32) -> (i32, i32) {
    %c0_i32 = arith.constant 0 : i32
    %c0_i32_0 = arith.constant 0 : i32
    %c0_i32_1 = arith.constant 0 : i32
    return %c0_i32, %c0_i32_0 : i32, i32
  }
  func.func @transform_6(%arg0: i32) -> (i32, i32) {
    %c0_i32 = arith.constant 0 : i32
    %c0_i32_0 = arith.constant 0 : i32
    %c0_i32_1 = arith.constant 0 : i32
    return %c0_i32, %c0_i32_0 : i32, i32
  }
  func.func @transform_7(%arg0: i32) -> (i32, i32) {
    %c0_i32 = arith.constant 0 : i32
    %c0_i32_0 = arith.constant 0 : i32
    %c0_i32_1 = arith.constant 0 : i32
    return %c0_i32, %c0_i32_0 : i32, i32
  }
  func.func @transform_8(%arg0: i32) -> (i32, i32) {
    %c0_i32 = arith.constant 0 : i32
    %c0_i32_0 = arith.constant 0 : i32
    %c0_i32_1 = arith.constant 0 : i32
    return %c0_i32, %c0_i32_0 : i32, i32
  }
  func.func @transform_9(%arg0: i32) -> (i32, i32) {
    %c0_i32 = arith.constant 0 : i32
    %c0_i32_0 = arith.constant 0 : i32
    return %arg0, %c0_i32 : i32, i32
  }
}

</mosaic_0001>

<llo_original>
// kernel: tpu_custom_call.1
$region0: #{tpu_custom_call.1}
  #allocation0 [shape = 'u32[]', space=smem, size = 0x4, offset = 0x4, fixed_abs, tag = 'smem constant byte address 0x4 - core index']
  #allocation1 [shape = 'u32[144,128]{1,0:T(1,128)}', space=vmem, size = 0x12000, scoped, tag = 'internal scratch']
  %s0 = inlined_call_operand.hbm [shape: bf16[8,512], index: 0, kind: input, shape index: {}]
  %s1 = inlined_call_operand.hbm [shape: f32[1,256], index: 1, kind: input, shape index: {}]
  %s2 = inlined_call_operand.hbm [shape: bf16[512,256], index: 2, kind: input, shape index: {}]
  %s3 = inlined_call_operand.hbm [shape: bf16[256,256], index: 3, kind: input, shape index: {}]
  %s4 = inlined_call_operand.vmem [shape: f32[1,256], index: 4, kind: input, shape index: {}]
  %s5 = inlined_call_operand.hbm [shape: bf16[256,256], index: 5, kind: input, shape index: {}]
  %s6 = inlined_call_operand.vmem [shape: f32[1,256], index: 6, kind: input, shape index: {}]
  %s7 = inlined_call_operand.hbm [shape: bf16[256,256], index: 7, kind: input, shape index: {}]
  %s8 = inlined_call_operand.vmem [shape: f32[1,256], index: 8, kind: input, shape index: {}]
  %s9 = inlined_call_operand.hbm [shape: f32[8,256], index: 9, kind: output, shape index: {}]
  %s10 = sld [smem:[#allocation0]]
  $region70: #{tpu_custom_call.1} parent=0
    _
  %s12 = ssub.s32 1, %s10
  %s13 = scalar_select 0, %s12, %s10
  $region1: #{tpu_custom_call.1} parent=0
    #allocation2 [shape = 'u8[8192]{0}', space=vmem, size = 0x2000, scoped, tag = 'input window, operand 0, single buffered']
    #allocation3 [shape = 's32[1]{0}', space=sflag, size = 0x4, scoped, tag = 'scoped memory for tpu_custom_call.1']
    #allocation4 [shape = 's32[1]{0}', space=sflag, size = 0x4, scoped, tag = 'scoped memory for tpu_custom_call.1']
    #allocation5 [shape = 'u8[1024]{0}', space=vmem, size = 0x400, scoped, tag = 'input window, operand 1, single buffered']
    #allocation6 [shape = 's32[1]{0}', space=sflag, size = 0x4, scoped, tag = 'scoped memory for tpu_custom_call.1']
    #allocation7 [shape = 'u8[262144]{0}', space=vmem, size = 0x40000, scoped, tag = 'input window, operand 2, single buffered']
    #allocation8 [shape = 'u8[131072]{0}', space=vmem, size = 0x20000, scoped, tag = 'input window, operand 3, single buffered']
    #allocation9 [shape = 's32[1]{0}', space=sflag, size = 0x4, scoped, tag = 'scoped memory for tpu_custom_call.1']
    #allocation10 [shape = 'u8[131072]{0}', space=vmem, size = 0x20000, scoped, tag = 'input window, operand 5, single buffered']
    #allocation11 [shape = 'u8[131072]{0}', space=vmem, size = 0x20000, scoped, tag = 'input window, operand 7, single buffered']
    #allocation12 [shape = 's32[1]{0}', space=sflag, size = 0x4, scoped, tag = 'scoped memory for tpu_custom_call.1']
    #allocation13 [shape = 'u8[8192]{0}', space=vmem, size = 0x2000, scoped, tag = 'output window, operand 0, single buffered']
    %14 = vsyncpa [#allocation3], 0
    %15 = vsyncpa [#allocation6], 0
    %16 = vsyncpa [#allocation9], 0
    %17 = vsyncpa [#allocation12], 0
    %18 = vsyncpa [#allocation4], 0
    // Predicated region
    $region2: #{tpu_custom_call.1} parent=1 // pred_check
      _
    $region3: #{tpu_custom_call.1} parent=1 // pred_check_branch
      %20 = sbr.rel (0) target = $region5
    $region4: #{tpu_custom_call.1} parent=1 // pred_region
      %s22 = ssub.s32 256, 256
      %23 = vsyncadd [#allocation3], %s22
      %s25 = sshll.u32 [#allocation2], 4
      %s26 = int_to_ptr.vmem [resolvable:$true] %s25
      %28 = dma.hbm_to_vmem [thread:$0]  %s0, 256, %s26, [#allocation3]
    $region5: #{tpu_custom_call.1} parent=1 // pred_fallthru
      _
    // Predicated region
    $region6: #{tpu_custom_call.1} parent=1 // pred_check
      _
    $region7: #{tpu_custom_call.1} parent=1 // pred_check_branch
      %30 = sbr.rel (0) target = $region9
    $region8: #{tpu_custom_call.1} parent=1 // pred_region
      %s32 = ssub.s32 32, 32
      %33 = vsyncadd [#allocation6], %s32
      %s35 = sshll.u32 [#allocation5], 4
      %s36 = int_to_ptr.vmem [resolvable:$true] %s35
      %38 = dma.hbm_to_vmem [thread:$0]  %s1, 32, %s36, [#allocation6]
    $region9: #{tpu_custom_call.1} parent=1 // pred_fallthru
      _
    // Predicated region
    $region10: #{tpu_custom_call.1} parent=1 // pred_check
      _
    $region11: #{tpu_custom_call.1} parent=1 // pred_check_branch
      %40 = sbr.rel (0) target = $region13
    $region12: #{tpu_custom_call.1} parent=1 // pred_region
      %s42 = ssub.s32 8192, 8192
      %43 = vsyncadd [#allocation6], %s42
      %s44 = sshll.u32 [#allocation7], 4
      %s45 = int_to_ptr.vmem [resolvable:$true] %s44
      %50 = dma.hbm_to_vmem [thread:$0]  %s2, 8192, %s45, [#allocation6], 128, 128, 8
    $region13: #{tpu_custom_call.1} parent=1 // pred_fallthru
      _
    // Predicated region
    $region14: #{tpu_custom_call.1} parent=1 // pred_check
      _
    $region15: #{tpu_custom_call.1} parent=1 // pred_check_branch
      %52 = sbr.rel (0) target = $region17
    $region16: #{tpu_custom_call.1} parent=1 // pred_region
      %s54 = ssub.s32 4096, 4096
      %55 = vsyncadd [#allocation9], %s54
      %s56 = sshll.u32 [#allocation8], 4
      %s57 = int_to_ptr.vmem [resolvable:$true] %s56
      %62 = dma.hbm_to_vmem [thread:$0]  %s3, 4096, %s57, [#allocation9], 128, 128, 8
    $region17: #{tpu_custom_call.1} parent=1 // pred_fallthru
      _
    // Predicated region
    $region18: #{tpu_custom_call.1} parent=1 // pred_check
      _
    $region19: #{tpu_custom_call.1} parent=1 // pred_check_branch
      %64 = sbr.rel (0) target = $region21
    $region20: #{tpu_custom_call.1} parent=1 // pred_region
      _
    $region21: #{tpu_custom_call.1} parent=1 // pred_fallthru
      _
    // Predicated region
    $region22: #{tpu_custom_call.1} parent=1 // pred_check
      _
    $region23: #{tpu_custom_call.1} parent=1 // pred_check_branch
      %66 = sbr.rel (0) target = $region25
    $region24: #{tpu_custom_call.1} parent=1 // pred_region
      %s68 = ssub.s32 4096, 4096
      %69 = vsyncadd [#allocation9], %s68
      %s70 = sshll.u32 [#allocation10], 4
      %s71 = int_to_ptr.vmem [resolvable:$true] %s70
      %76 = dma.hbm_to_vmem [thread:$0]  %s5, 4096, %s71, [#allocation9], 128, 128, 8
    $region25: #{tpu_custom_call.1} parent=1 // pred_fallthru
      _
    // Predicated region
    $region26: #{tpu_custom_call.1} parent=1 // pred_check
      _
    $region27: #{tpu_custom_call.1} parent=1 // pred_check_branch
      %78 = sbr.rel (0) target = $region29
    $region28: #{tpu_custom_call.1} parent=1 // pred_region
      _
    $region29: #{tpu_custom_call.1} parent=1 // pred_fallthru
      _
    // Predicated region
    $region30: #{tpu_custom_call.1} parent=1 // pred_check
      _
    $region31: #{tpu_custom_call.1} parent=1 // pred_check_branch
      %80 = sbr.rel (0) target = $region33
    $region32: #{tpu_custom_call.1} parent=1 // pred_region
      %s82 = ssub.s32 4096, 4096
      %83 = vsyncadd [#allocation12], %s82
      %s84 = sshll.u32 [#allocation11], 4
      %s85 = int_to_ptr.vmem [resolvable:$true] %s84
      %90 = dma.hbm_to_vmem [thread:$0]  %s7, 4096, %s85, [#allocation12], 128, 128, 8
    $region33: #{tpu_custom_call.1} parent=1 // pred_fallthru
      _
    // Predicated region
    $region34: #{tpu_custom_call.1} parent=1 // pred_check
      _
    $region35: #{tpu_custom_call.1} parent=1 // pred_check_branch
      %92 = sbr.rel (0) target = $region37
    $region36: #{tpu_custom_call.1} parent=1 // pred_region
      _
    $region37: #{tpu_custom_call.1} parent=1 // pred_fallthru
      _
    // Predicated region
    $region38: #{tpu_custom_call.1} parent=1 // pred_check
      _
    $region39: #{tpu_custom_call.1} parent=1 // pred_check_branch
      %94 = sbr.rel (0) target = $region41
    $region40: #{tpu_custom_call.1} parent=1 // pred_region
      %95 = dma.done [#allocation3], 256
    $region41: #{tpu_custom_call.1} parent=1 // pred_fallthru
      _
    // Predicated region
    $region42: #{tpu_custom_call.1} parent=1 // pred_check
      _
    $region43: #{tpu_custom_call.1} parent=1 // pred_check_branch
      %97 = sbr.rel (0) target = $region45
    $region44: #{tpu_custom_call.1} parent=1 // pred_region
      %98 = dma.done [#allocation6], 32
    $region45: #{tpu_custom_call.1} parent=1 // pred_fallthru
      _
    // Predicated region
    $region46: #{tpu_custom_call.1} parent=1 // pred_check
      _
    $region47: #{tpu_custom_call.1} parent=1 // pred_check_branch
      %100 = sbr.rel (0) target = $region49
    $region48: #{tpu_custom_call.1} parent=1 // pred_region
      %101 = dma.done [#allocation6], 8192
    $region49: #{tpu_custom_call.1} parent=1 // pred_fallthru
      _
    // Predicated region
    $region50: #{tpu_custom_call.1} parent=1 // pred_check
      _
    $region51: #{tpu_custom_call.1} parent=1 // pred_check_branch
      %103 = sbr.rel (0) target = $region53
    $region52: #{tpu_custom_call.1} parent=1 // pred_region
      %104 = dma.done [#allocation9], 4096
    $region53: #{tpu_custom_call.1} parent=1 // pred_fallthru
      _
    // Predicated region
    $region54: #{tpu_custom_call.1} parent=1 // pred_check
      _
    $region55: #{tpu_custom_call.1} parent=1 // pred_check_branch
      %106 = sbr.rel (0) target = $region57
    $region56: #{tpu_custom_call.1} parent=1 // pred_region
      %107 = dma.done [#allocation9], 4096
    $region57: #{tpu_custom_call.1} parent=1 // pred_fallthru
      _
    // Predicated region
    $region58: #{tpu_custom_call.1} parent=1 // pred_check
      _
    $region59: #{tpu_custom_call.1} parent=1 // pred_check_branch
      %109 = sbr.rel (0) target = $region61
    $region60: #{tpu_custom_call.1} parent=1 // pred_region
      %110 = dma.done [#allocation12], 4096
    $region61: #{tpu_custom_call.1} parent=1 // pred_fallthru
      _
    %v111 = vld [vmem:[#allocation2] sm:$0xff]
    %v112 = vld [vmem:[#allocation2 + $0x8] sm:$0xff]
    %v113 = vld [vmem:[#allocation7] sm:$0xff]
    %v114 = vld [vmem:[#allocation7 + $0x8] sm:$0xff]
    %v115 = vld [vmem:[#allocation7 + $0x10] sm:$0xff]
    %v116 = vld [vmem:[#allocation7 + $0x18] sm:$0xff]
    %v117 = vld [vmem:[#allocation7 + $0x20] sm:$0xff]
    %v118 = vld [vmem:[#allocation7 + $0x28] sm:$0xff]
    %v119 = vld [vmem:[#allocation7 + $0x30] sm:$0xff]
    %v120 = vld [vmem:[#allocation7 + $0x38] sm:$0xff]
    %v121 = vld [vmem:[#allocation7 + $0x40] sm:$0xff]
    %v122 = vld [vmem:[#allocation7 + $0x48] sm:$0xff]
    %v123 = vld [vmem:[#allocation7 + $0x50] sm:$0xff]
    %v124 = vld [vmem:[#allocation7 + $0x58] sm:$0xff]
    %v125 = vld [vmem:[#allocation7 + $0x60] sm:$0xff]
    %v126 = vld [vmem:[#allocation7 + $0x68] sm:$0xff]
    %v127 = vld [vmem:[#allocation7 + $0x70] sm:$0xff]
    %v128 = vld [vmem:[#allocation7 + $0x78] sm:$0xff]
    %v129 = vld [vmem:[#allocation7 + $0x80] sm:$0xff]
    %v130 = vld [vmem:[#allocation7 + $0x88] sm:$0xff]
    %v131 = vld [vmem:[#allocation7 + $0x90] sm:$0xff]
    %v132 = vld [vmem:[#allocation7 + $0x98] sm:$0xff]
    %v133 = vld [vmem:[#allocation7 + $0xa0] sm:$0xff]
    %v134 = vld [vmem:[#allocation7 + $0xa8] sm:$0xff]
    %v135 = vld [vmem:[#allocation7 + $0xb0] sm:$0xff]
    %v136 = vld [vmem:[#allocation7 + $0xb8] sm:$0xff]
    %v137 = vld [vmem:[#allocation7 + $0xc0] sm:$0xff]
    %v138 = vld [vmem:[#allocation7 + $0xc8] sm:$0xff]
    %v139 = vld [vmem:[#allocation7 + $0xd0] sm:$0xff]
    %v140 = vld [vmem:[#allocation7 + $0xd8] sm:$0xff]
    %v141 = vld [vmem:[#allocation7 + $0xe0] sm:$0xff]
    %v142 = vld [vmem:[#allocation7 + $0xe8] sm:$0xff]
    %v143 = vld [vmem:[#allocation7 + $0xf0] sm:$0xff]
    %v144 = vld [vmem:[#allocation7 + $0xf8] sm:$0xff]
    %v145 = vld [vmem:[#allocation7 + $0x100] sm:$0xff]
    %v146 = vld [vmem:[#allocation7 + $0x108] sm:$0xff]
    %v147 = vld [vmem:[#allocation7 + $0x110] sm:$0xff]
    %v148 = vld [vmem:[#allocation7 + $0x118] sm:$0xff]
    %v149 = vld [vmem:[#allocation7 + $0x120] sm:$0xff]
    %v150 = vld [vmem:[#allocation7 + $0x128] sm:$0xff]
    %v151 = vld [vmem:[#allocation7 + $0x130] sm:$0xff]
    %v152 = vld [vmem:[#allocation7 + $0x138] sm:$0xff]
    %v153 = vld [vmem:[#allocation7 + $0x140] sm:$0xff]
    %v154 = vld [vmem:[#allocation7 + $0x148] sm:$0xff]
    %v155 = vld [vmem:[#allocation7 + $0x150] sm:$0xff]
    %v156 = vld [vmem:[#allocation7 + $0x158] sm:$0xff]
    %v157 = vld [vmem:[#allocation7 + $0x160] sm:$0xff]
    %v158 = vld [vmem:[#allocation7 + $0x168] sm:$0xff]
    %v159 = vld [vmem:[#allocation7 + $0x170] sm:$0xff]
    %v160 = vld [vmem:[#allocation7 + $0x178] sm:$0xff]
    %v161 = vld [vmem:[#allocation7 + $0x180] sm:$0xff]
    %v162 = vld [vmem:[#allocation7 + $0x188] sm:$0xff]
    %v163 = vld [vmem:[#allocation7 + $0x190] sm:$0xff]
    %v164 = vld [vmem:[#allocation7 + $0x198] sm:$0xff]
    %v165 = vld [vmem:[#allocation7 + $0x1a0] sm:$0xff]
    %v166 = vld [vmem:[#allocation7 + $0x1a8] sm:$0xff]
    %v167 = vld [vmem:[#allocation7 + $0x1b0] sm:$0xff]
    %v168 = vld [vmem:[#allocation7 + $0x1b8] sm:$0xff]
    %v169 = vld [vmem:[#allocation7 + $0x1c0] sm:$0xff]
    %v170 = vld [vmem:[#allocation7 + $0x1c8] sm:$0xff]
    %v171 = vld [vmem:[#allocation7 + $0x1d0] sm:$0xff]
    %v172 = vld [vmem:[#allocation7 + $0x1d8] sm:$0xff]
    %v173 = vld [vmem:[#allocation7 + $0x1e0] sm:$0xff]
    %v174 = vld [vmem:[#allocation7 + $0x1e8] sm:$0xff]
    %v175 = vld [vmem:[#allocation7 + $0x1f0] sm:$0xff]
    %v176 = vld [vmem:[#allocation7 + $0x1f8] sm:$0xff]
    %v177 = vld [vmem:[#allocation8] sm:$0xff]
    %v178 = vld [vmem:[#allocation8 + $0x8] sm:$0xff]
    %v179 = vld [vmem:[#allocation8 + $0x10] sm:$0xff]
    %v180 = vld [vmem:[#allocation8 + $0x18] sm:$0xff]
    %v181 = vld [vmem:[#allocation8 + $0x20] sm:$0xff]
    %v182 = vld [vmem:[#allocation8 + $0x28] sm:$0xff]
    %v183 = vld [vmem:[#allocation8 + $0x30] sm:$0xff]
    %v184 = vld [vmem:[#allocation8 + $0x38] sm:$0xff]
    %v185 = vld [vmem:[#allocation8 + $0x40] sm:$0xff]
    %v186 = vld [vmem:[#allocation8 + $0x48] sm:$0xff]
    %v187 = vld [vmem:[#allocation8 + $0x50] sm:$0xff]
    %v188 = vld [vmem:[#allocation8 + $0x58] sm:$0xff]
    %v189 = vld [vmem:[#allocation8 + $0x60] sm:$0xff]
    %v190 = vld [vmem:[#allocation8 + $0x68] sm:$0xff]
    %v191 = vld [vmem:[#allocation8 + $0x70] sm:$0xff]
    %v192 = vld [vmem:[#allocation8 + $0x78] sm:$0xff]
    %v193 = vld [vmem:[#allocation8 + $0x80] sm:$0xff]
    %v194 = vld [vmem:[#allocation8 + $0x88] sm:$0xff]
    %v195 = vld [vmem:[#allocation8 + $0x90] sm:$0xff]
    %v196 = vld [vmem:[#allocation8 + $0x98] sm:$0xff]
    %v197 = vld [vmem:[#allocation8 + $0xa0] sm:$0xff]
    %v198 = vld [vmem:[#allocation8 + $0xa8] sm:$0xff]
    %v199 = vld [vmem:[#allocation8 + $0xb0] sm:$0xff]
    %v200 = vld [vmem:[#allocation8 + $0xb8] sm:$0xff]
    %v201 = vld [vmem:[#allocation8 + $0xc0] sm:$0xff]
    %v202 = vld [vmem:[#allocation8 + $0xc8] sm:$0xff]
    %v203 = vld [vmem:[#allocation8 + $0xd0] sm:$0xff]
    %v204 = vld [vmem:[#allocation8 + $0xd8] sm:$0xff]
    %v205 = vld [vmem:[#allocation8 + $0xe0] sm:$0xff]
    %v206 = vld [vmem:[#allocation8 + $0xe8] sm:$0xff]
    %v207 = vld [vmem:[#allocation8 + $0xf0] sm:$0xff]
    %v208 = vld [vmem:[#allocation8 + $0xf8] sm:$0xff]
    %v209 = vld [vmem:[#allocation10] sm:$0xff]
    %v210 = vld [vmem:[#allocation10 + $0x8] sm:$0xff]
    %v211 = vld [vmem:[#allocation10 + $0x10] sm:$0xff]
    %v212 = vld [vmem:[#allocation10 + $0x18] sm:$0xff]
    %v213 = vld [vmem:[#allocation10 + $0x20] sm:$0xff]
    %v214 = vld [vmem:[#allocation10 + $0x28] sm:$0xff]
    %v215 = vld [vmem:[#allocation10 + $0x30] sm:$0xff]
    %v216 = vld [vmem:[#allocation10 + $0x38] sm:$0xff]
    %v217 = vld [vmem:[#allocation10 + $0x40] sm:$0xff]
    %v218 = vld [vmem:[#allocation10 + $0x48] sm:$0xff]
    %v219 = vld [vmem:[#allocation10 + $0x50] sm:$0xff]
    %v220 = vld [vmem:[#allocation10 + $0x58] sm:$0xff]
    %v221 = vld [vmem:[#allocation10 + $0x60] sm:$0xff]
    %v222 = vld [vmem:[#allocation10 + $0x68] sm:$0xff]
    %v223 = vld [vmem:[#allocation10 + $0x70] sm:$0xff]
    %v224 = vld [vmem:[#allocation10 + $0x78] sm:$0xff]
    %v225 = vld [vmem:[#allocation10 + $0x80] sm:$0xff]
    %v226 = vld [vmem:[#allocation10 + $0x88] sm:$0xff]
    %v227 = vld [vmem:[#allocation10 + $0x90] sm:$0xff]
    %v228 = vld [vmem:[#allocation10 + $0x98] sm:$0xff]
    %v229 = vld [vmem:[#allocation10 + $0xa0] sm:$0xff]
    %v230 = vld [vmem:[#allocation10 + $0xa8] sm:$0xff]
    %v231 = vld [vmem:[#allocation10 + $0xb0] sm:$0xff]
    %v232 = vld [vmem:[#allocation10 + $0xb8] sm:$0xff]
    %v233 = vld [vmem:[#allocation10 + $0xc0] sm:$0xff]
    %v234 = vld [vmem:[#allocation10 + $0xc8] sm:$0xff]
    %v235 = vld [vmem:[#allocation10 + $0xd0] sm:$0xff]
    %v236 = vld [vmem:[#allocation10 + $0xd8] sm:$0xff]
    %v237 = vld [vmem:[#allocation10 + $0xe0] sm:$0xff]
    %v238 = vld [vmem:[#allocation10 + $0xe8] sm:$0xff]
    %v239 = vld [vmem:[#allocation10 + $0xf0] sm:$0xff]
    %v240 = vld [vmem:[#allocation10 + $0xf8] sm:$0xff]
    %v241 = vld [vmem:[#allocation11] sm:$0xff]
    %v242 = vld [vmem:[#allocation11 + $0x8] sm:$0xff]
    %v243 = vld [vmem:[#allocation11 + $0x10] sm:$0xff]
    %v244 = vld [vmem:[#allocation11 + $0x18] sm:$0xff]
    %v245 = vld [vmem:[#allocation11 + $0x20] sm:$0xff]
    %v246 = vld [vmem:[#allocation11 + $0x28] sm:$0xff]
    %v247 = vld [vmem:[#allocation11 + $0x30] sm:$0xff]
    %v248 = vld [vmem:[#allocation11 + $0x38] sm:$0xff]
    %v249 = vld [vmem:[#allocation11 + $0x40] sm:$0xff]
    %v250 = vld [vmem:[#allocation11 + $0x48] sm:$0xff]
    %v251 = vld [vmem:[#allocation11 + $0x50] sm:$0xff]
    %v252 = vld [vmem:[#allocation11 + $0x58] sm:$0xff]
    %v253 = vld [vmem:[#allocation11 + $0x60] sm:$0xff]
    %v254 = vld [vmem:[#allocation11 + $0x68] sm:$0xff]
    %v255 = vld [vmem:[#allocation11 + $0x70] sm:$0xff]
    %v256 = vld [vmem:[#allocation11 + $0x78] sm:$0xff]
    %v257 = vld [vmem:[#allocation11 + $0x80] sm:$0xff]
    %v258 = vld [vmem:[#allocation11 + $0x88] sm:$0xff]
    %v259 = vld [vmem:[#allocation11 + $0x90] sm:$0xff]
    %v260 = vld [vmem:[#allocation11 + $0x98] sm:$0xff]
    %v261 = vld [vmem:[#allocation11 + $0xa0] sm:$0xff]
    %v262 = vld [vmem:[#allocation11 + $0xa8] sm:$0xff]
    %v263 = vld [vmem:[#allocation11 + $0xb0] sm:$0xff]
    %v264 = vld [vmem:[#allocation11 + $0xb8] sm:$0xff]
    %v265 = vld [vmem:[#allocation11 + $0xc0] sm:$0xff]
    %v266 = vld [vmem:[#allocation11 + $0xc8] sm:$0xff]
    %v267 = vld [vmem:[#allocation11 + $0xd0] sm:$0xff]
    %v268 = vld [vmem:[#allocation11 + $0xd8] sm:$0xff]
    %v269 = vld [vmem:[#allocation11 + $0xe0] sm:$0xff]
    %v270 = vld [vmem:[#allocation11 + $0xe8] sm:$0xff]
    %v271 = vld [vmem:[#allocation11 + $0xf0] sm:$0xff]
    %v272 = vld [vmem:[#allocation11 + $0xf8] sm:$0xff]
    %v273 = vld [vmem:[%s4] sm:$0x3]
    %v274 = vld [vmem:[%s6] sm:$0x3]
    %v276 = vlaneseq
    %v277 = vshrl.u32 %v276, 7
    %v278 = vsub.s32 0, %v277
    %v279 = vrot.slane %v274, %v278
    %v280 = vlaneseq
    %v281 = vshrl.u32 %v280, 7
    %v282 = vsub.s32 1, %v281
    %v283 = vrot.slane %v274, %v282
    %v286 = vld [vmem:[%s8] sm:$0x3]
    %v288 = vlaneseq
    %v289 = vshrl.u32 %v288, 7
    %v290 = vsub.s32 0, %v289
    %v291 = vrot.slane %v286, %v290
    %v292 = vlaneseq
    %v293 = vshrl.u32 %v292, 7
    %v294 = vsub.s32 1, %v293
    %v295 = vrot.slane %v286, %v294
    %v299 = vlaneseq
    %v300 = vshrl.u32 %v299, 7
    %v301 = vsub.s32 0, %v300
    %v302 = vrot.slane %v273, %v301
    %v303 = vlaneseq
    %v304 = vshrl.u32 %v303, 7
    %v305 = vsub.s32 1, %v304
    %v306 = vrot.slane %v273, %v305
    %v311 = vunpack.c.l.b16 %v111
    %v312 = vunpack.c.h.b16 %v111
    %v313 = vunpack.c.l.b16 %v112
    %v314 = vunpack.c.h.b16 %v112
    %v315 = vpack.c.b16 %v311, %v311
    %v316 = vpack.c.b16 %v312, %v312
    %v317 = vpack.c.b16 %v313, %v313
    %v318 = vpack.c.b16 %v314, %v314
    %v387 = vunpack.c.l.b16 %v113
    %v388 = vunpack.c.h.b16 %v113
    %v389 = vunpack.c.l.b16 %v114
    %v390 = vunpack.c.h.b16 %v114
    %v391 = vunpack.c.l.b16 %v115
    %v392 = vunpack.c.h.b16 %v115
    %v393 = vunpack.c.l.b16 %v116
    %v394 = vunpack.c.h.b16 %v116
    %v395 = vunpack.c.l.b16 %v117
    %v396 = vunpack.c.h.b16 %v117
    %v397 = vunpack.c.l.b16 %v118
    %v398 = vunpack.c.h.b16 %v118
    %v399 = vunpack.c.l.b16 %v119
    %v400 = vunpack.c.h.b16 %v119
    %v401 = vunpack.c.l.b16 %v120
    %v402 = vunpack.c.h.b16 %v120
    %v403 = vunpack.c.l.b16 %v121
    %v404 = vunpack.c.h.b16 %v121
    %v405 = vunpack.c.l.b16 %v122
    %v406 = vunpack.c.h.b16 %v122
    %v407 = vunpack.c.l.b16 %v123
    %v408 = vunpack.c.h.b16 %v123
    %v409 = vunpack.c.l.b16 %v124
    %v410 = vunpack.c.h.b16 %v124
    %v411 = vunpack.c.l.b16 %v125
    %v412 = vunpack.c.h.b16 %v125
    %v413 = vunpack.c.l.b16 %v126
    %v414 = vunpack.c.h.b16 %v126
    %v415 = vunpack.c.l.b16 %v127
    %v416 = vunpack.c.h.b16 %v127
    %v417 = vunpack.c.l.b16 %v128
    %v418 = vunpack.c.h.b16 %v128
    %v419 = vunpack.c.l.b16 %v129
    %v420 = vunpack.c.h.b16 %v129
    %v421 = vunpack.c.l.b16 %v130
    %v422 = vunpack.c.h.b16 %v130
    %v423 = vunpack.c.l.b16 %v131
    %v424 = vunpack.c.h.b16 %v131
    %v425 = vunpack.c.l.b16 %v132
    %v426 = vunpack.c.h.b16 %v132
    %v427 = vunpack.c.l.b16 %v133
    %v428 = vunpack.c.h.b16 %v133
    %v429 = vunpack.c.l.b16 %v134
    %v430 = vunpack.c.h.b16 %v134
    %v431 = vunpack.c.l.b16 %v135
    %v432 = vunpack.c.h.b16 %v135
    %v433 = vunpack.c.l.b16 %v136
    %v434 = vunpack.c.h.b16 %v136
    %v435 = vunpack.c.l.b16 %v137
    %v436 = vunpack.c.h.b16 %v137
    %v437 = vunpack.c.l.b16 %v138
    %v438 = vunpack.c.h.b16 %v138
    %v439 = vunpack.c.l.b16 %v139
    %v440 = vunpack.c.h.b16 %v139
    %v441 = vunpack.c.l.b16 %v140
    %v442 = vunpack.c.h.b16 %v140
    %v443 = vunpack.c.l.b16 %v141
    %v444 = vunpack.c.h.b16 %v141
    %v445 = vunpack.c.l.b16 %v142
    %v446 = vunpack.c.h.b16 %v142
    %v447 = vunpack.c.l.b16 %v143
    %v448 = vunpack.c.h.b16 %v143
    %v449 = vunpack.c.l.b16 %v144
    %v450 = vunpack.c.h.b16 %v144
    %v451 = vunpack.c.l.b16 %v145
    %v452 = vunpack.c.h.b16 %v145
    %v453 = vunpack.c.l.b16 %v146
    %v454 = vunpack.c.h.b16 %v146
    %v455 = vunpack.c.l.b16 %v147
    %v456 = vunpack.c.h.b16 %v147
    %v457 = vunpack.c.l.b16 %v148
    %v458 = vunpack.c.h.b16 %v148
    %v459 = vunpack.c.l.b16 %v149
    %v460 = vunpack.c.h.b16 %v149
    %v461 = vunpack.c.l.b16 %v150
    %v462 = vunpack.c.h.b16 %v150
    %v463 = vunpack.c.l.b16 %v151
    %v464 = vunpack.c.h.b16 %v151
    %v465 = vunpack.c.l.b16 %v152
    %v466 = vunpack.c.h.b16 %v152
    %v467 = vunpack.c.l.b16 %v153
    %v468 = vunpack.c.h.b16 %v153
    %v469 = vunpack.c.l.b16 %v154
    %v470 = vunpack.c.h.b16 %v154
    %v471 = vunpack.c.l.b16 %v155
    %v472 = vunpack.c.h.b16 %v155
    %v473 = vunpack.c.l.b16 %v156
    %v474 = vunpack.c.h.b16 %v156
    %v475 = vunpack.c.l.b16 %v157
    %v476 = vunpack.c.h.b16 %v157
    %v477 = vunpack.c.l.b16 %v158
    %v478 = vunpack.c.h.b16 %v158
    %v479 = vunpack.c.l.b16 %v159
    %v480 = vunpack.c.h.b16 %v159
    %v481 = vunpack.c.l.b16 %v160
    %v482 = vunpack.c.h.b16 %v160
    %v483 = vunpack.c.l.b16 %v161
    %v484 = vunpack.c.h.b16 %v161
    %v485 = vunpack.c.l.b16 %v162
    %v486 = vunpack.c.h.b16 %v162
    %v487 = vunpack.c.l.b16 %v163
    %v488 = vunpack.c.h.b16 %v163
    %v489 = vunpack.c.l.b16 %v164
    %v490 = vunpack.c.h.b16 %v164
    %v491 = vunpack.c.l.b16 %v165
    %v492 = vunpack.c.h.b16 %v165
    %v493 = vunpack.c.l.b16 %v166
    %v494 = vunpack.c.h.b16 %v166
    %v495 = vunpack.c.l.b16 %v167
    %v496 = vunpack.c.h.b16 %v167
    %v497 = vunpack.c.l.b16 %v168
    %v498 = vunpack.c.h.b16 %v168
    %v499 = vunpack.c.l.b16 %v169
    %v500 = vunpack.c.h.b16 %v169
    %v501 = vunpack.c.l.b16 %v170
    %v502 = vunpack.c.h.b16 %v170
    %v503 = vunpack.c.l.b16 %v171
    %v504 = vunpack.c.h.b16 %v171
    %v505 = vunpack.c.l.b16 %v172
    %v506 = vunpack.c.h.b16 %v172
    %v507 = vunpack.c.l.b16 %v173
    %v508 = vunpack.c.h.b16 %v173
    %v509 = vunpack.c.l.b16 %v174
    %v510 = vunpack.c.h.b16 %v174
    %v511 = vunpack.c.l.b16 %v175
    %v512 = vunpack.c.h.b16 %v175
    %v513 = vunpack.c.l.b16 %v176
    %v514 = vunpack.c.h.b16 %v176
    %v515 = vpack.c.b16 %v389, %v387
    %v516 = vpack.c.b16 %v390, %v388
    %v517 = vpack.c.b16 %v393, %v391
    %v518 = vpack.c.b16 %v394, %v392
    %v519 = vpack.c.b16 %v397, %v395
    %v520 = vpack.c.b16 %v398, %v396
    %v521 = vpack.c.b16 %v401, %v399
    %v522 = vpack.c.b16 %v402, %v400
    %v523 = vpack.c.b16 %v405, %v403
    %v524 = vpack.c.b16 %v406, %v404
    %v525 = vpack.c.b16 %v409, %v407
    %v526 = vpack.c.b16 %v410, %v408
    %v527 = vpack.c.b16 %v413, %v411
    %v528 = vpack.c.b16 %v414, %v412
    %v529 = vpack.c.b16 %v417, %v415
    %v530 = vpack.c.b16 %v418, %v416
    %v531 = vpack.c.b16 %v421, %v419
    %v532 = vpack.c.b16 %v422, %v420
    %v533 = vpack.c.b16 %v425, %v423
    %v534 = vpack.c.b16 %v426, %v424
    %v535 = vpack.c.b16 %v429, %v427
    %v536 = vpack.c.b16 %v430, %v428
    %v537 = vpack.c.b16 %v433, %v431
    %v538 = vpack.c.b16 %v434, %v432
    %v539 = vpack.c.b16 %v437, %v435
    %v540 = vpack.c.b16 %v438, %v436
    %v541 = vpack.c.b16 %v441, %v439
    %v542 = vpack.c.b16 %v442, %v440
    %v543 = vpack.c.b16 %v445, %v443
    %v544 = vpack.c.b16 %v446, %v444
    %v545 = vpack.c.b16 %v449, %v447
    %v546 = vpack.c.b16 %v450, %v448
    %v547 = vpack.c.b16 %v453, %v451
    %v548 = vpack.c.b16 %v454, %v452
    %v549 = vpack.c.b16 %v457, %v455
    %v550 = vpack.c.b16 %v458, %v456
    %v551 = vpack.c.b16 %v461, %v459
    %v552 = vpack.c.b16 %v462, %v460
    %v553 = vpack.c.b16 %v465, %v463
    %v554 = vpack.c.b16 %v466, %v464
    %v555 = vpack.c.b16 %v469, %v467
    %v556 = vpack.c.b16 %v470, %v468
    %v557 = vpack.c.b16 %v473, %v471
    %v558 = vpack.c.b16 %v474, %v472
    %v559 = vpack.c.b16 %v477, %v475
    %v560 = vpack.c.b16 %v478, %v476
    %v561 = vpack.c.b16 %v481, %v479
    %v562 = vpack.c.b16 %v482, %v480
    %v563 = vpack.c.b16 %v485, %v483
    %v564 = vpack.c.b16 %v486, %v484
    %v565 = vpack.c.b16 %v489, %v487
    %v566 = vpack.c.b16 %v490, %v488
    %v567 = vpack.c.b16 %v493, %v491
    %v568 = vpack.c.b16 %v494, %v492
    %v569 = vpack.c.b16 %v497, %v495
    %v570 = vpack.c.b16 %v498, %v496
    %v571 = vpack.c.b16 %v501, %v499
    %v572 = vpack.c.b16 %v502, %v500
    %v573 = vpack.c.b16 %v505, %v503
    %v574 = vpack.c.b16 %v506, %v504
    %v575 = vpack.c.b16 %v509, %v507
    %v576 = vpack.c.b16 %v510, %v508
    %v577 = vpack.c.b16 %v513, %v511
    %v578 = vpack.c.b16 %v514, %v512
    %643 = vmatprep.subr.bf16.mxu0 %v530
    %644 = vmatpush1.bf16.msra.mxu0 %v529
    %645 = vmatprep.subr.bf16.mxu0 %v528
    %646 = vmatpush1.bf16.msra.mxu0 %v527
    %647 = vmatprep.subr.bf16.mxu0 %v526
    %648 = vmatpush1.bf16.msra.mxu0 %v525
    %649 = vmatprep.subr.bf16.mxu0 %v524
    %650 = vmatpush1.bf16.msra.mxu0 %v523
    %651 = vmatprep.subr.bf16.mxu0 %v522
    %652 = vmatpush1.bf16.msra.mxu0 %v521
    %653 = vmatprep.subr.bf16.mxu0 %v520
    %654 = vmatpush1.bf16.msra.mxu0 %v519
    %655 = vmatprep.subr.bf16.mxu0 %v518
    %656 = vmatpush1.bf16.msra.mxu0 %v517
    %657 = vmatprep.subr.bf16.mxu0 %v516
    %658 = vmatpush1.bf16.msra.mxu0 %v515
    %659 = vmatprep.subr.bf16.mxu0 %v546
    %660 = vmatpush2.bf16.msra.mxu0 %v545
    %661 = vmatprep.subr.bf16.mxu0 %v544
    %662 = vmatpush2.bf16.msra.mxu0 %v543
    %663 = vmatprep.subr.bf16.mxu0 %v542
    %664 = vmatpush2.bf16.msra.mxu0 %v541
    %665 = vmatprep.subr.bf16.mxu0 %v540
    %666 = vmatpush2.bf16.msra.mxu0 %v539
    %667 = vmatprep.subr.bf16.mxu0 %v538
    %668 = vmatpush2.bf16.msra.mxu0 %v537
    %669 = vmatprep.subr.bf16.mxu0 %v536
    %670 = vmatpush2.bf16.msra.mxu0 %v535
    %671 = vmatprep.subr.bf16.mxu0 %v534
    %672 = vmatpush2.bf16.msra.mxu0 %v533
    %673 = vmatprep.subr.bf16.mxu0 %v532
    %674 = vmatpush2.bf16.msra.mxu0 %v531
    %675 = vmatprep.mubr.bf16.mxu0 %v316
    %676 = vmatmul.mubr.bf16.gmra.mxu0 %v315
    %v677 = vpop.f32.mrf.mxu0
    %v678 = vadd.f32 %v302, %v677
    %v679 = vpop.f32.mrf.mxu0
    %v680 = vadd.f32 %v306, %v679
    %v681 = vpop.f32.mrf.mxu0
    %v682 = vpop.f32.mrf.mxu0
    %683 = vdwg.mxu0
    %684 = vmatprep.subr.bf16.mxu0 %v562
    %685 = vmatpush1.bf16.msra.mxu0 %v561
    %686 = vmatprep.subr.bf16.mxu0 %v560
    %687 = vmatpush1.bf16.msra.mxu0 %v559
    %688 = vmatprep.subr.bf16.mxu0 %v558
    %689 = vmatpush1.bf16.msra.mxu0 %v557
    %690 = vmatprep.subr.bf16.mxu0 %v556
    %691 = vmatpush1.bf16.msra.mxu0 %v555
    %692 = vmatprep.subr.bf16.mxu0 %v554
    %693 = vmatpush1.bf16.msra.mxu0 %v553
    %694 = vmatprep.subr.bf16.mxu0 %v552
    %695 = vmatpush1.bf16.msra.mxu0 %v551
    %696 = vmatprep.subr.bf16.mxu0 %v550
    %697 = vmatpush1.bf16.msra.mxu0 %v549
    %698 = vmatprep.subr.bf16.mxu0 %v548
    %699 = vmatpush1.bf16.msra.mxu0 %v547
    %700 = vmatprep.subr.bf16.mxu0 %v578
    %701 = vmatpush2.bf16.msra.mxu0 %v577
    %702 = vmatprep.subr.bf16.mxu0 %v576
    %703 = vmatpush2.bf16.msra.mxu0 %v575
    %704 = vmatprep.subr.bf16.mxu0 %v574
    %705 = vmatpush2.bf16.msra.mxu0 %v573
    %706 = vmatprep.subr.bf16.mxu0 %v572
    %707 = vmatpush2.bf16.msra.mxu0 %v571
    %708 = vmatprep.subr.bf16.mxu0 %v570
    %709 = vmatpush2.bf16.msra.mxu0 %v569
    %710 = vmatprep.subr.bf16.mxu0 %v568
    %711 = vmatpush2.bf16.msra.mxu0 %v567
    %712 = vmatprep.subr.bf16.mxu0 %v566
    %713 = vmatpush2.bf16.msra.mxu0 %v565
    %714 = vmatprep.subr.bf16.mxu0 %v564
    %715 = vmatpush2.bf16.msra.mxu0 %v563
    %716 = vmatprep.mubr.bf16.mxu0 %v318
    %717 = vmatmul.mubr.bf16.gmra.mxu0 %v317
    %v718 = vpop.f32.mrf.mxu0
    %v719 = vadd.f32 %v678, %v718
    %v720 = vpop.f32.mrf.mxu0
    %v721 = vadd.f32 %v680, %v720
    %v722 = vpop.f32.mrf.mxu0
    %v723 = vpop.f32.mrf.mxu0
    %724 = vdwg.mxu0
    %v725 = vld [vmem:[#allocation5] sm:$0x3]
    %v727 = vlaneseq
    %v728 = vshrl.u32 %v727, 7
    %v729 = vsub.s32 0, %v728
    %v730 = vrot.slane %v725, %v729
    %v731 = vlaneseq
    %v732 = vshrl.u32 %v731, 7
    %v733 = vsub.s32 1, %v732
    %v734 = vrot.slane %v725, %v733
    %v737 = vpack.c.bf16 %v730, %v730
    %v738 = vpack.c.bf16 %v734, %v734
    %v771 = vunpack.c.l.b16 %v177
    %v772 = vunpack.c.h.b16 %v177
    %v773 = vunpack.c.l.b16 %v178
    %v774 = vunpack.c.h.b16 %v178
    %v775 = vunpack.c.l.b16 %v179
    %v776 = vunpack.c.h.b16 %v179
    %v777 = vunpack.c.l.b16 %v180
    %v778 = vunpack.c.h.b16 %v180
    %v779 = vunpack.c.l.b16 %v181
    %v780 = vunpack.c.h.b16 %v181
    %v781 = vunpack.c.l.b16 %v182
    %v782 = vunpack.c.h.b16 %v182
    %v783 = vunpack.c.l.b16 %v183
    %v784 = vunpack.c.h.b16 %v183
    %v785 = vunpack.c.l.b16 %v184
    %v786 = vunpack.c.h.b16 %v184
    %v787 = vunpack.c.l.b16 %v185
    %v788 = vunpack.c.h.b16 %v185
    %v789 = vunpack.c.l.b16 %v186
    %v790 = vunpack.c.h.b16 %v186
    %v791 = vunpack.c.l.b16 %v187
    %v792 = vunpack.c.h.b16 %v187
    %v793 = vunpack.c.l.b16 %v188
    %v794 = vunpack.c.h.b16 %v188
    %v795 = vunpack.c.l.b16 %v189
    %v796 = vunpack.c.h.b16 %v189
    %v797 = vunpack.c.l.b16 %v190
    %v798 = vunpack.c.h.b16 %v190
    %v799 = vunpack.c.l.b16 %v191
    %v800 = vunpack.c.h.b16 %v191
    %v801 = vunpack.c.l.b16 %v192
    %v802 = vunpack.c.h.b16 %v192
    %v803 = vunpack.c.l.b16 %v193
    %v804 = vunpack.c.h.b16 %v193
    %v805 = vunpack.c.l.b16 %v194
    %v806 = vunpack.c.h.b16 %v194
    %v807 = vunpack.c.l.b16 %v195
    %v808 = vunpack.c.h.b16 %v195
    %v809 = vunpack.c.l.b16 %v196
    %v810 = vunpack.c.h.b16 %v196
    %v811 = vunpack.c.l.b16 %v197
    %v812 = vunpack.c.h.b16 %v197
    %v813 = vunpack.c.l.b16 %v198
    %v814 = vunpack.c.h.b16 %v198
    %v815 = vunpack.c.l.b16 %v199
    %v816 = vunpack.c.h.b16 %v199
    %v817 = vunpack.c.l.b16 %v200
    %v818 = vunpack.c.h.b16 %v200
    %v819 = vunpack.c.l.b16 %v201
    %v820 = vunpack.c.h.b16 %v201
    %v821 = vunpack.c.l.b16 %v202
    %v822 = vunpack.c.h.b16 %v202
    %v823 = vunpack.c.l.b16 %v203
    %v824 = vunpack.c.h.b16 %v203
    %v825 = vunpack.c.l.b16 %v204
    %v826 = vunpack.c.h.b16 %v204
    %v827 = vunpack.c.l.b16 %v205
    %v828 = vunpack.c.h.b16 %v205
    %v829 = vunpack.c.l.b16 %v206
    %v830 = vunpack.c.h.b16 %v206
    %v831 = vunpack.c.l.b16 %v207
    %v832 = vunpack.c.h.b16 %v207
    %v833 = vunpack.c.l.b16 %v208
    %v834 = vunpack.c.h.b16 %v208
    %v835 = vpack.c.b16 %v773, %v771
    %v836 = vpack.c.b16 %v774, %v772
    %v837 = vpack.c.b16 %v777, %v775
    %v838 = vpack.c.b16 %v778, %v776
    %v839 = vpack.c.b16 %v781, %v779
    %v840 = vpack.c.b16 %v782, %v780
    %v841 = vpack.c.b16 %v785, %v783
    %v842 = vpack.c.b16 %v786, %v784
    %v843 = vpack.c.b16 %v789, %v787
    %v844 = vpack.c.b16 %v790, %v788
    %v845 = vpack.c.b16 %v793, %v791
    %v846 = vpack.c.b16 %v794, %v792
    %v847 = vpack.c.b16 %v797, %v795
    %v848 = vpack.c.b16 %v798, %v796
    %v849 = vpack.c.b16 %v801, %v799
    %v850 = vpack.c.b16 %v802, %v800
    %v851 = vpack.c.b16 %v805, %v803
    %v852 = vpack.c.b16 %v806, %v804
    %v853 = vpack.c.b16 %v809, %v807
    %v854 = vpack.c.b16 %v810, %v808
    %v855 = vpack.c.b16 %v813, %v811
    %v856 = vpack.c.b16 %v814, %v812
    %v857 = vpack.c.b16 %v817, %v815
    %v858 = vpack.c.b16 %v818, %v816
    %v859 = vpack.c.b16 %v821, %v819
    %v860 = vpack.c.b16 %v822, %v820
    %v861 = vpack.c.b16 %v825, %v823
    %v862 = vpack.c.b16 %v826, %v824
    %v863 = vpack.c.b16 %v829, %v827
    %v864 = vpack.c.b16 %v830, %v828
    %v865 = vpack.c.b16 %v833, %v831
    %v866 = vpack.c.b16 %v834, %v832
    %899 = vmatprep.subr.bf16.mxu0 %v850
    %900 = vmatpush1.bf16.msra.mxu0 %v849
    %901 = vmatprep.subr.bf16.mxu0 %v848
    %902 = vmatpush1.bf16.msra.mxu0 %v847
    %903 = vmatprep.subr.bf16.mxu0 %v846
    %904 = vmatpush1.bf16.msra.mxu0 %v845
    %905 = vmatprep.subr.bf16.mxu0 %v844
    %906 = vmatpush1.bf16.msra.mxu0 %v843
    %907 = vmatprep.subr.bf16.mxu0 %v842
    %908 = vmatpush1.bf16.msra.mxu0 %v841
    %909 = vmatprep.subr.bf16.mxu0 %v840
    %910 = vmatpush1.bf16.msra.mxu0 %v839
    %911 = vmatprep.subr.bf16.mxu0 %v838
    %912 = vmatpush1.bf16.msra.mxu0 %v837
    %913 = vmatprep.subr.bf16.mxu0 %v836
    %914 = vmatpush1.bf16.msra.mxu0 %v835
    %915 = vmatprep.subr.bf16.mxu0 %v866
    %916 = vmatpush2.bf16.msra.mxu0 %v865
    %917 = vmatprep.subr.bf16.mxu0 %v864
    %918 = vmatpush2.bf16.msra.mxu0 %v863
    %919 = vmatprep.subr.bf16.mxu0 %v862
    %920 = vmatpush2.bf16.msra.mxu0 %v861
    %921 = vmatprep.subr.bf16.mxu0 %v860
    %922 = vmatpush2.bf16.msra.mxu0 %v859
    %923 = vmatprep.subr.bf16.mxu0 %v858
    %924 = vmatpush2.bf16.msra.mxu0 %v857
    %925 = vmatprep.subr.bf16.mxu0 %v856
    %926 = vmatpush2.bf16.msra.mxu0 %v855
    %927 = vmatprep.subr.bf16.mxu0 %v854
    %928 = vmatpush2.bf16.msra.mxu0 %v853
    %929 = vmatprep.subr.bf16.mxu0 %v852
    %930 = vmatpush2.bf16.msra.mxu0 %v851
    %931 = vmatprep.mubr.bf16.mxu0 %v738
    %932 = vmatmul.mubr.bf16.gmra.mxu0 %v737
    %v933 = vpop.f32.mrf.mxu0
    %v934 = vadd.f32 0.0, %v933
    %v935 = vpop.f32.mrf.mxu0
    %v936 = vadd.f32 0.0, %v935
    %v937 = vpop.f32.mrf.mxu0
    %v938 = vpop.f32.mrf.mxu0
    %939 = vdwg.mxu0
    %v940 = vadd.f32 %v719, %v934
    %v941 = vadd.f32 %v721, %v936
    %v942 = vpack.c.bf16 %v940, %v940
    %v943 = vpack.c.bf16 %v941, %v941
    %v976 = vunpack.c.l.b16 %v209
    %v977 = vunpack.c.h.b16 %v209
    %v978 = vunpack.c.l.b16 %v210
    %v979 = vunpack.c.h.b16 %v210
    %v980 = vunpack.c.l.b16 %v211
    %v981 = vunpack.c.h.b16 %v211
    %v982 = vunpack.c.l.b16 %v212
    %v983 = vunpack.c.h.b16 %v212
    %v984 = vunpack.c.l.b16 %v213
    %v985 = vunpack.c.h.b16 %v213
    %v986 = vunpack.c.l.b16 %v214
    %v987 = vunpack.c.h.b16 %v214
    %v988 = vunpack.c.l.b16 %v215
    %v989 = vunpack.c.h.b16 %v215
    %v990 = vunpack.c.l.b16 %v216
    %v991 = vunpack.c.h.b16 %v216
    %v992 = vunpack.c.l.b16 %v217
    %v993 = vunpack.c.h.b16 %v217
    %v994 = vunpack.c.l.b16 %v218
    %v995 = vunpack.c.h.b16 %v218
    %v996 = vunpack.c.l.b16 %v219
    %v997 = vunpack.c.h.b16 %v219
    %v998 = vunpack.c.l.b16 %v220
    %v999 = vunpack.c.h.b16 %v220
    %v1000 = vunpack.c.l.b16 %v221
    %v1001 = vunpack.c.h.b16 %v221
    %v1002 = vunpack.c.l.b16 %v222
    %v1003 = vunpack.c.h.b16 %v222
    %v1004 = vunpack.c.l.b16 %v223
    %v1005 = vunpack.c.h.b16 %v223
    %v1006 = vunpack.c.l.b16 %v224
    %v1007 = vunpack.c.h.b16 %v224
    %v1008 = vunpack.c.l.b16 %v225
    %v1009 = vunpack.c.h.b16 %v225
    %v1010 = vunpack.c.l.b16 %v226
    %v1011 = vunpack.c.h.b16 %v226
    %v1012 = vunpack.c.l.b16 %v227
    %v1013 = vunpack.c.h.b16 %v227
    %v1014 = vunpack.c.l.b16 %v228
    %v1015 = vunpack.c.h.b16 %v228
    %v1016 = vunpack.c.l.b16 %v229
    %v1017 = vunpack.c.h.b16 %v229
    %v1018 = vunpack.c.l.b16 %v230
    %v1019 = vunpack.c.h.b16 %v230
    %v1020 = vunpack.c.l.b16 %v231
    %v1021 = vunpack.c.h.b16 %v231
    %v1022 = vunpack.c.l.b16 %v232
    %v1023 = vunpack.c.h.b16 %v232
    %v1024 = vunpack.c.l.b16 %v233
    %v1025 = vunpack.c.h.b16 %v233
    %v1026 = vunpack.c.l.b16 %v234
    %v1027 = vunpack.c.h.b16 %v234
    %v1028 = vunpack.c.l.b16 %v235
    %v1029 = vunpack.c.h.b16 %v235
    %v1030 = vunpack.c.l.b16 %v236
    %v1031 = vunpack.c.h.b16 %v236
    %v1032 = vunpack.c.l.b16 %v237
    %v1033 = vunpack.c.h.b16 %v237
    %v1034 = vunpack.c.l.b16 %v238
    %v1035 = vunpack.c.h.b16 %v238
    %v1036 = vunpack.c.l.b16 %v239
    %v1037 = vunpack.c.h.b16 %v239
    %v1038 = vunpack.c.l.b16 %v240
    %v1039 = vunpack.c.h.b16 %v240
    %v1040 = vpack.c.b16 %v978, %v976
    %v1041 = vpack.c.b16 %v979, %v977
    %v1042 = vpack.c.b16 %v982, %v980
    %v1043 = vpack.c.b16 %v983, %v981
    %v1044 = vpack.c.b16 %v986, %v984
    %v1045 = vpack.c.b16 %v987, %v985
    %v1046 = vpack.c.b16 %v990, %v988
    %v1047 = vpack.c.b16 %v991, %v989
    %v1048 = vpack.c.b16 %v994, %v992
    %v1049 = vpack.c.b16 %v995, %v993
    %v1050 = vpack.c.b16 %v998, %v996
    %v1051 = vpack.c.b16 %v999, %v997
    %v1052 = vpack.c.b16 %v1002, %v1000
    %v1053 = vpack.c.b16 %v1003, %v1001
    %v1054 = vpack.c.b16 %v1006, %v1004
    %v1055 = vpack.c.b16 %v1007, %v1005
    %v1056 = vpack.c.b16 %v1010, %v1008
    %v1057 = vpack.c.b16 %v1011, %v1009
    %v1058 = vpack.c.b16 %v1014, %v1012
    %v1059 = vpack.c.b16 %v1015, %v1013
    %v1060 = vpack.c.b16 %v1018, %v1016
    %v1061 = vpack.c.b16 %v1019, %v1017
    %v1062 = vpack.c.b16 %v1022, %v1020
    %v1063 = vpack.c.b16 %v1023, %v1021
    %v1064 = vpack.c.b16 %v1026, %v1024
    %v1065 = vpack.c.b16 %v1027, %v1025
    %v1066 = vpack.c.b16 %v1030, %v1028
    %v1067 = vpack.c.b16 %v1031, %v1029
    %v1068 = vpack.c.b16 %v1034, %v1032
    %v1069 = vpack.c.b16 %v1035, %v1033
    %v1070 = vpack.c.b16 %v1038, %v1036
    %v1071 = vpack.c.b16 %v1039, %v1037
    %1104 = vmatprep.subr.bf16.mxu0 %v1055
    %1105 = vmatpush1.bf16.msra.mxu0 %v1054
    %1106 = vmatprep.subr.bf16.mxu0 %v1053
    %1107 = vmatpush1.bf16.msra.mxu0 %v1052
    %1108 = vmatprep.subr.bf16.mxu0 %v1051
    %1109 = vmatpush1.bf16.msra.mxu0 %v1050
    %1110 = vmatprep.subr.bf16.mxu0 %v1049
    %1111 = vmatpush1.bf16.msra.mxu0 %v1048
    %1112 = vmatprep.subr.bf16.mxu0 %v1047
    %1113 = vmatpush1.bf16.msra.mxu0 %v1046
    %1114 = vmatprep.subr.bf16.mxu0 %v1045
    %1115 = vmatpush1.bf16.msra.mxu0 %v1044
    %1116 = vmatprep.subr.bf16.mxu0 %v1043
    %1117 = vmatpush1.bf16.msra.mxu0 %v1042
    %1118 = vmatprep.subr.bf16.mxu0 %v1041
    %1119 = vmatpush1.bf16.msra.mxu0 %v1040
    %1120 = vmatprep.subr.bf16.mxu0 %v1071
    %1121 = vmatpush2.bf16.msra.mxu0 %v1070
    %1122 = vmatprep.subr.bf16.mxu0 %v1069
    %1123 = vmatpush2.bf16.msra.mxu0 %v1068
    %1124 = vmatprep.subr.bf16.mxu0 %v1067
    %1125 = vmatpush2.bf16.msra.mxu0 %v1066
    %1126 = vmatprep.subr.bf16.mxu0 %v1065
    %1127 = vmatpush2.bf16.msra.mxu0 %v1064
    %1128 = vmatprep.subr.bf16.mxu0 %v1063
    %1129 = vmatpush2.bf16.msra.mxu0 %v1062
    %1130 = vmatprep.subr.bf16.mxu0 %v1061
    %1131 = vmatpush2.bf16.msra.mxu0 %v1060
    %1132 = vmatprep.subr.bf16.mxu0 %v1059
    %1133 = vmatpush2.bf16.msra.mxu0 %v1058
    %1134 = vmatprep.subr.bf16.mxu0 %v1057
    %1135 = vmatpush2.bf16.msra.mxu0 %v1056
    %1136 = vmatprep.mubr.bf16.mxu0 %v943
    %1137 = vmatmul.mubr.bf16.gmra.mxu0 %v942
    %v1138 = vpop.f32.mrf.mxu0
    %v1139 = vadd.f32 %v279, %v1138
    %v1140 = vpop.f32.mrf.mxu0
    %v1141 = vadd.f32 %v283, %v1140
    %v1142 = vpop.f32.mrf.mxu0
    %v1143 = vpop.f32.mrf.mxu0
    %1144 = vdwg.mxu0
    %v1145 = vpack.c.bf16 %v1139, %v1139
    %v1146 = vpack.c.bf16 %v1141, %v1141
    %v1179 = vunpack.c.l.b16 %v241
    %v1180 = vunpack.c.h.b16 %v241
    %v1181 = vunpack.c.l.b16 %v242
    %v1182 = vunpack.c.h.b16 %v242
    %v1183 = vunpack.c.l.b16 %v243
    %v1184 = vunpack.c.h.b16 %v243
    %v1185 = vunpack.c.l.b16 %v244
    %v1186 = vunpack.c.h.b16 %v244
    %v1187 = vunpack.c.l.b16 %v245
    %v1188 = vunpack.c.h.b16 %v245
    %v1189 = vunpack.c.l.b16 %v246
    %v1190 = vunpack.c.h.b16 %v246
    %v1191 = vunpack.c.l.b16 %v247
    %v1192 = vunpack.c.h.b16 %v247
    %v1193 = vunpack.c.l.b16 %v248
    %v1194 = vunpack.c.h.b16 %v248
    %v1195 = vunpack.c.l.b16 %v249
    %v1196 = vunpack.c.h.b16 %v249
    %v1197 = vunpack.c.l.b16 %v250
    %v1198 = vunpack.c.h.b16 %v250
    %v1199 = vunpack.c.l.b16 %v251
    %v1200 = vunpack.c.h.b16 %v251
    %v1201 = vunpack.c.l.b16 %v252
    %v1202 = vunpack.c.h.b16 %v252
    %v1203 = vunpack.c.l.b16 %v253
    %v1204 = vunpack.c.h.b16 %v253
    %v1205 = vunpack.c.l.b16 %v254
    %v1206 = vunpack.c.h.b16 %v254
    %v1207 = vunpack.c.l.b16 %v255
    %v1208 = vunpack.c.h.b16 %v255
    %v1209 = vunpack.c.l.b16 %v256
    %v1210 = vunpack.c.h.b16 %v256
    %v1211 = vunpack.c.l.b16 %v257
    %v1212 = vunpack.c.h.b16 %v257
    %v1213 = vunpack.c.l.b16 %v258
    %v1214 = vunpack.c.h.b16 %v258
    %v1215 = vunpack.c.l.b16 %v259
    %v1216 = vunpack.c.h.b16 %v259
    %v1217 = vunpack.c.l.b16 %v260
    %v1218 = vunpack.c.h.b16 %v260
    %v1219 = vunpack.c.l.b16 %v261
    %v1220 = vunpack.c.h.b16 %v261
    %v1221 = vunpack.c.l.b16 %v262
    %v1222 = vunpack.c.h.b16 %v262
    %v1223 = vunpack.c.l.b16 %v263
    %v1224 = vunpack.c.h.b16 %v263
    %v1225 = vunpack.c.l.b16 %v264
    %v1226 = vunpack.c.h.b16 %v264
    %v1227 = vunpack.c.l.b16 %v265
    %v1228 = vunpack.c.h.b16 %v265
    %v1229 = vunpack.c.l.b16 %v266
    %v1230 = vunpack.c.h.b16 %v266
    %v1231 = vunpack.c.l.b16 %v267
    %v1232 = vunpack.c.h.b16 %v267
    %v1233 = vunpack.c.l.b16 %v268
    %v1234 = vunpack.c.h.b16 %v268
    %v1235 = vunpack.c.l.b16 %v269
    %v1236 = vunpack.c.h.b16 %v269
    %v1237 = vunpack.c.l.b16 %v270
    %v1238 = vunpack.c.h.b16 %v270
    %v1239 = vunpack.c.l.b16 %v271
    %v1240 = vunpack.c.h.b16 %v271
    %v1241 = vunpack.c.l.b16 %v272
    %v1242 = vunpack.c.h.b16 %v272
    %v1243 = vpack.c.b16 %v1181, %v1179
    %v1244 = vpack.c.b16 %v1182, %v1180
    %v1245 = vpack.c.b16 %v1185, %v1183
    %v1246 = vpack.c.b16 %v1186, %v1184
    %v1247 = vpack.c.b16 %v1189, %v1187
    %v1248 = vpack.c.b16 %v1190, %v1188
    %v1249 = vpack.c.b16 %v1193, %v1191
    %v1250 = vpack.c.b16 %v1194, %v1192
    %v1251 = vpack.c.b16 %v1197, %v1195
    %v1252 = vpack.c.b16 %v1198, %v1196
    %v1253 = vpack.c.b16 %v1201, %v1199
    %v1254 = vpack.c.b16 %v1202, %v1200
    %v1255 = vpack.c.b16 %v1205, %v1203
    %v1256 = vpack.c.b16 %v1206, %v1204
    %v1257 = vpack.c.b16 %v1209, %v1207
    %v1258 = vpack.c.b16 %v1210, %v1208
    %v1259 = vpack.c.b16 %v1213, %v1211
    %v1260 = vpack.c.b16 %v1214, %v1212
    %v1261 = vpack.c.b16 %v1217, %v1215
    %v1262 = vpack.c.b16 %v1218, %v1216
    %v1263 = vpack.c.b16 %v1221, %v1219
    %v1264 = vpack.c.b16 %v1222, %v1220
    %v1265 = vpack.c.b16 %v1225, %v1223
    %v1266 = vpack.c.b16 %v1226, %v1224
    %v1267 = vpack.c.b16 %v1229, %v1227
    %v1268 = vpack.c.b16 %v1230, %v1228
    %v1269 = vpack.c.b16 %v1233, %v1231
    %v1270 = vpack.c.b16 %v1234, %v1232
    %v1271 = vpack.c.b16 %v1237, %v1235
    %v1272 = vpack.c.b16 %v1238, %v1236
    %v1273 = vpack.c.b16 %v1241, %v1239
    %v1274 = vpack.c.b16 %v1242, %v1240
    %1307 = vmatprep.subr.bf16.mxu0 %v1258
    %1308 = vmatpush1.bf16.msra.mxu0 %v1257
    %1309 = vmatprep.subr.bf16.mxu0 %v1256
    %1310 = vmatpush1.bf16.msra.mxu0 %v1255
    %1311 = vmatprep.subr.bf16.mxu0 %v1254
    %1312 = vmatpush1.bf16.msra.mxu0 %v1253
    %1313 = vmatprep.subr.bf16.mxu0 %v1252
    %1314 = vmatpush1.bf16.msra.mxu0 %v1251
    %1315 = vmatprep.subr.bf16.mxu0 %v1250
    %1316 = vmatpush1.bf16.msra.mxu0 %v1249
    %1317 = vmatprep.subr.bf16.mxu0 %v1248
    %1318 = vmatpush1.bf16.msra.mxu0 %v1247
    %1319 = vmatprep.subr.bf16.mxu0 %v1246
    %1320 = vmatpush1.bf16.msra.mxu0 %v1245
    %1321 = vmatprep.subr.bf16.mxu0 %v1244
    %1322 = vmatpush1.bf16.msra.mxu0 %v1243
    %1323 = vmatprep.subr.bf16.mxu0 %v1274
    %1324 = vmatpush2.bf16.msra.mxu0 %v1273
    %1325 = vmatprep.subr.bf16.mxu0 %v1272
    %1326 = vmatpush2.bf16.msra.mxu0 %v1271
    %1327 = vmatprep.subr.bf16.mxu0 %v1270
    %1328 = vmatpush2.bf16.msra.mxu0 %v1269
    %1329 = vmatprep.subr.bf16.mxu0 %v1268
    %1330 = vmatpush2.bf16.msra.mxu0 %v1267
    %1331 = vmatprep.subr.bf16.mxu0 %v1266
    %1332 = vmatpush2.bf16.msra.mxu0 %v1265
    %1333 = vmatprep.subr.bf16.mxu0 %v1264
    %1334 = vmatpush2.bf16.msra.mxu0 %v1263
    %1335 = vmatprep.subr.bf16.mxu0 %v1262
    %1336 = vmatpush2.bf16.msra.mxu0 %v1261
    %1337 = vmatprep.subr.bf16.mxu0 %v1260
    %1338 = vmatpush2.bf16.msra.mxu0 %v1259
    %1339 = vmatprep.mubr.bf16.mxu0 %v1146
    %1340 = vmatmul.mubr.bf16.gmra.mxu0 %v1145
    %v1341 = vpop.f32.mrf.mxu0
    %v1342 = vadd.f32 0.0, %v1341
    %v1343 = vpop.f32.mrf.mxu0
    %v1344 = vadd.f32 0.0, %v1343
    %v1345 = vpop.f32.mrf.mxu0
    %v1346 = vpop.f32.mrf.mxu0
    %1347 = vdwg.mxu0
    %v1348 = vadd.f32 %v730, %v1342
    %v1349 = vadd.f32 %v734, %v1344
    %v1350 = vadd.f32 %v1348, %v291
    %v1351 = vadd.f32 %v1349, %v295
    %v1352 = vpack.c.bf16 %v1350, %v1350
    %v1353 = vpack.c.bf16 %v1351, %v1351
    %1354 = vmatprep.subr.bf16.mxu0 %v850
    %1355 = vmatpush1.bf16.msra.mxu0 %v849
    %1356 = vmatprep.subr.bf16.mxu0 %v848
    %1357 = vmatpush1.bf16.msra.mxu0 %v847
    %1358 = vmatprep.subr.bf16.mxu0 %v846
    %1359 = vmatpush1.bf16.msra.mxu0 %v845
    %1360 = vmatprep.subr.bf16.mxu0 %v844
    %1361 = vmatpush1.bf16.msra.mxu0 %v843
    %1362 = vmatprep.subr.bf16.mxu0 %v842
    %1363 = vmatpush1.bf16.msra.mxu0 %v841
    %1364 = vmatprep.subr.bf16.mxu0 %v840
    %1365 = vmatpush1.bf16.msra.mxu0 %v839
    %1366 = vmatprep.subr.bf16.mxu0 %v838
    %1367 = vmatpush1.bf16.msra.mxu0 %v837
    %1368 = vmatprep.subr.bf16.mxu0 %v836
    %1369 = vmatpush1.bf16.msra.mxu0 %v835
    %1370 = vmatprep.subr.bf16.mxu0 %v866
    %1371 = vmatpush2.bf16.msra.mxu0 %v865
    %1372 = vmatprep.subr.bf16.mxu0 %v864
    %1373 = vmatpush2.bf16.msra.mxu0 %v863
    %1374 = vmatprep.subr.bf16.mxu0 %v862
    %1375 = vmatpush2.bf16.msra.mxu0 %v861
    %1376 = vmatprep.subr.bf16.mxu0 %v860
    %1377 = vmatpush2.bf16.msra.mxu0 %v859
    %1378 = vmatprep.subr.bf16.mxu0 %v858
    %1379 = vmatpush2.bf16.msra.mxu0 %v857
    %1380 = vmatprep.subr.bf16.mxu0 %v856
    %1381 = vmatpush2.bf16.msra.mxu0 %v855
    %1382 = vmatprep.subr.bf16.mxu0 %v854
    %1383 = vmatpush2.bf16.msra.mxu0 %v853
    %1384 = vmatprep.subr.bf16.mxu0 %v852
    %1385 = vmatpush2.bf16.msra.mxu0 %v851
    %1386 = vmatprep.mubr.bf16.mxu0 %v1353
    %1387 = vmatmul.mubr.bf16.gmra.mxu0 %v1352
    %v1388 = vpop.f32.mrf.mxu0
    %v1389 = vadd.f32 0.0, %v1388
    %v1390 = vpop.f32.mrf.mxu0
    %v1391 = vadd.f32 0.0, %v1390
    %v1392 = vpop.f32.mrf.mxu0
    %v1393 = vpop.f32.mrf.mxu0
    %1394 = vdwg.mxu0
    %v1395 = vadd.f32 %v719, %v1389
    %v1396 = vadd.f32 %v721, %v1391
    %v1397 = vpack.c.bf16 %v1395, %v1395
    %v1398 = vpack.c.bf16 %v1396, %v1396
    %1399 = vmatprep.subr.bf16.mxu0 %v1055
    %1400 = vmatpush1.bf16.msra.mxu0 %v1054
    %1401 = vmatprep.subr.bf16.mxu0 %v1053
    %1402 = vmatpush1.bf16.msra.mxu0 %v1052
    %1403 = vmatprep.subr.bf16.mxu0 %v1051
    %1404 = vmatpush1.bf16.msra.mxu0 %v1050
    %1405 = vmatprep.subr.bf16.mxu0 %v1049
    %1406 = vmatpush1.bf16.msra.mxu0 %v1048
    %1407 = vmatprep.subr.bf16.mxu0 %v1047
    %1408 = vmatpush1.bf16.msra.mxu0 %v1046
    %1409 = vmatprep.subr.bf16.mxu0 %v1045
    %1410 = vmatpush1.bf16.msra.mxu0 %v1044
    %1411 = vmatprep.subr.bf16.mxu0 %v1043
    %1412 = vmatpush1.bf16.msra.mxu0 %v1042
    %1413 = vmatprep.subr.bf16.mxu0 %v1041
    %1414 = vmatpush1.bf16.msra.mxu0 %v1040
    %1415 = vmatprep.subr.bf16.mxu0 %v1071
    %1416 = vmatpush2.bf16.msra.mxu0 %v1070
    %1417 = vmatprep.subr.bf16.mxu0 %v1069
    %1418 = vmatpush2.bf16.msra.mxu0 %v1068
    %1419 = vmatprep.subr.bf16.mxu0 %v1067
    %1420 = vmatpush2.bf16.msra.mxu0 %v1066
    %1421 = vmatprep.subr.bf16.mxu0 %v1065
    %1422 = vmatpush2.bf16.msra.mxu0 %v1064
    %1423 = vmatprep.subr.bf16.mxu0 %v1063
    %1424 = vmatpush2.bf16.msra.mxu0 %v1062
    %1425 = vmatprep.subr.bf16.mxu0 %v1061
    %1426 = vmatpush2.bf16.msra.mxu0 %v1060
    %1427 = vmatprep.subr.bf16.mxu0 %v1059
    %1428 = vmatpush2.bf16.msra.mxu0 %v1058
    %1429 = vmatprep.subr.bf16.mxu0 %v1057
    %1430 = vmatpush2.bf16.msra.mxu0 %v1056
    %1431 = vmatprep.mubr.bf16.mxu0 %v1398
    %1432 = vmatmul.mubr.bf16.gmra.mxu0 %v1397
    %v1433 = vpop.f32.mrf.mxu0
    %v1434 = vadd.f32 %v279, %v1433
    %v1435 = vpop.f32.mrf.mxu0
    %v1436 = vadd.f32 %v283, %v1435
    %v1437 = vpop.f32.mrf.mxu0
    %v1438 = vpop.f32.mrf.mxu0
    %1439 = vdwg.mxu0
    %v1440 = vpack.c.bf16 %v1434, %v1434
    %v1441 = vpack.c.bf16 %v1436, %v1436
    %1442 = vmatprep.subr.bf16.mxu0 %v1258
    %1443 = vmatpush1.bf16.msra.mxu0 %v1257
    %1444 = vmatprep.subr.bf16.mxu0 %v1256
    %1445 = vmatpush1.bf16.msra.mxu0 %v1255
    %1446 = vmatprep.subr.bf16.mxu0 %v1254
    %1447 = vmatpush1.bf16.msra.mxu0 %v1253
    %1448 = vmatprep.subr.bf16.mxu0 %v1252
    %1449 = vmatpush1.bf16.msra.mxu0 %v1251
    %1450 = vmatprep.subr.bf16.mxu0 %v1250
    %1451 = vmatpush1.bf16.msra.mxu0 %v1249
    %1452 = vmatprep.subr.bf16.mxu0 %v1248
    %1453 = vmatpush1.bf16.msra.mxu0 %v1247
    %1454 = vmatprep.subr.bf16.mxu0 %v1246
    %1455 = vmatpush1.bf16.msra.mxu0 %v1245
    %1456 = vmatprep.subr.bf16.mxu0 %v1244
    %1457 = vmatpush1.bf16.msra.mxu0 %v1243
    %1458 = vmatprep.subr.bf16.mxu0 %v1274
    %1459 = vmatpush2.bf16.msra.mxu0 %v1273
    %1460 = vmatprep.subr.bf16.mxu0 %v1272
    %1461 = vmatpush2.bf16.msra.mxu0 %v1271
    %1462 = vmatprep.subr.bf16.mxu0 %v1270
    %1463 = vmatpush2.bf16.msra.mxu0 %v1269
    %1464 = vmatprep.subr.bf16.mxu0 %v1268
    %1465 = vmatpush2.bf16.msra.mxu0 %v1267
    %1466 = vmatprep.subr.bf16.mxu0 %v1266
    %1467 = vmatpush2.bf16.msra.mxu0 %v1265
    %1468 = vmatprep.subr.bf16.mxu0 %v1264
    %1469 = vmatpush2.bf16.msra.mxu0 %v1263
    %1470 = vmatprep.subr.bf16.mxu0 %v1262
    %1471 = vmatpush2.bf16.msra.mxu0 %v1261
    %1472 = vmatprep.subr.bf16.mxu0 %v1260
    %1473 = vmatpush2.bf16.msra.mxu0 %v1259
    %1474 = vmatprep.mubr.bf16.mxu0 %v1441
    %1475 = vmatmul.mubr.bf16.gmra.mxu0 %v1440
    %v1476 = vpop.f32.mrf.mxu0
    %v1477 = vadd.f32 0.0, %v1476
    %v1478 = vpop.f32.mrf.mxu0
    %v1479 = vadd.f32 0.0, %v1478
    %v1480 = vpop.f32.mrf.mxu0
    %v1481 = vpop.f32.mrf.mxu0
    %1482 = vdwg.mxu0
    %v1483 = vadd.f32 %v1350, %v1477
    %v1484 = vadd.f32 %v1351, %v1479
    %v1485 = vadd.f32 %v1483, %v291
    %v1486 = vadd.f32 %v1484, %v295
    %v1487 = vpack.c.bf16 %v1485, %v1485
    %v1488 = vpack.c.bf16 %v1486, %v1486
    %1489 = vmatprep.subr.bf16.mxu0 %v850
    %1490 = vmatpush1.bf16.msra.mxu0 %v849
    %1491 = vmatprep.subr.bf16.mxu0 %v848
    %1492 = vmatpush1.bf16.msra.mxu0 %v847
    %1493 = vmatprep.subr.bf16.mxu0 %v846
    %1494 = vmatpush1.bf16.msra.mxu0 %v845
    %1495 = vmatprep.subr.bf16.mxu0 %v844
    %1496 = vmatpush1.bf16.msra.mxu0 %v843
    %1497 = vmatprep.subr.bf16.mxu0 %v842
    %1498 = vmatpush1.bf16.msra.mxu0 %v841
    %1499 = vmatprep.subr.bf16.mxu0 %v840
    %1500 = vmatpush1.bf16.msra.mxu0 %v839
    %1501 = vmatprep.subr.bf16.mxu0 %v838
    %1502 = vmatpush1.bf16.msra.mxu0 %v837
    %1503 = vmatprep.subr.bf16.mxu0 %v836
    %1504 = vmatpush1.bf16.msra.mxu0 %v835
    %1505 = vmatprep.subr.bf16.mxu0 %v866
    %1506 = vmatpush2.bf16.msra.mxu0 %v865
    %1507 = vmatprep.subr.bf16.mxu0 %v864
    %1508 = vmatpush2.bf16.msra.mxu0 %v863
    %1509 = vmatprep.subr.bf16.mxu0 %v862
    %1510 = vmatpush2.bf16.msra.mxu0 %v861
    %1511 = vmatprep.subr.bf16.mxu0 %v860
    %1512 = vmatpush2.bf16.msra.mxu0 %v859
    %1513 = vmatprep.subr.bf16.mxu0 %v858
    %1514 = vmatpush2.bf16.msra.mxu0 %v857
    %1515 = vmatprep.subr.bf16.mxu0 %v856
    %1516 = vmatpush2.bf16.msra.mxu0 %v855
    %1517 = vmatprep.subr.bf16.mxu0 %v854
    %1518 = vmatpush2.bf16.msra.mxu0 %v853
    %1519 = vmatprep.subr.bf16.mxu0 %v852
    %1520 = vmatpush2.bf16.msra.mxu0 %v851
    %1521 = vmatprep.mubr.bf16.mxu0 %v1488
    %1522 = vmatmul.mubr.bf16.gmra.mxu0 %v1487
    %v1523 = vpop.f32.mrf.mxu0
    %v1524 = vadd.f32 0.0, %v1523
    %v1525 = vpop.f32.mrf.mxu0
    %v1526 = vadd.f32 0.0, %v1525
    %v1527 = vpop.f32.mrf.mxu0
    %v1528 = vpop.f32.mrf.mxu0
    %1529 = vdwg.mxu0
    %v1530 = vadd.f32 %v719, %v1524
    %v1531 = vadd.f32 %v721, %v1526
    %v1532 = vpack.c.bf16 %v1530, %v1530
    %v1533 = vpack.c.bf16 %v1531, %v1531
    %1534 = vmatprep.subr.bf16.mxu0 %v1055
    %1535 = vmatpush1.bf16.msra.mxu0 %v1054
    %1536 = vmatprep.subr.bf16.mxu0 %v1053
    %1537 = vmatpush1.bf16.msra.mxu0 %v1052
    %1538 = vmatprep.subr.bf16.mxu0 %v1051
    %1539 = vmatpush1.bf16.msra.mxu0 %v1050
    %1540 = vmatprep.subr.bf16.mxu0 %v1049
    %1541 = vmatpush1.bf16.msra.mxu0 %v1048
    %1542 = vmatprep.subr.bf16.mxu0 %v1047
    %1543 = vmatpush1.bf16.msra.mxu0 %v1046
    %1544 = vmatprep.subr.bf16.mxu0 %v1045
    %1545 = vmatpush1.bf16.msra.mxu0 %v1044
    %1546 = vmatprep.subr.bf16.mxu0 %v1043
    %1547 = vmatpush1.bf16.msra.mxu0 %v1042
    %1548 = vmatprep.subr.bf16.mxu0 %v1041
    %1549 = vmatpush1.bf16.msra.mxu0 %v1040
    %1550 = vmatprep.subr.bf16.mxu0 %v1071
    %1551 = vmatpush2.bf16.msra.mxu0 %v1070
    %1552 = vmatprep.subr.bf16.mxu0 %v1069
    %1553 = vmatpush2.bf16.msra.mxu0 %v1068
    %1554 = vmatprep.subr.bf16.mxu0 %v1067
    %1555 = vmatpush2.bf16.msra.mxu0 %v1066
    %1556 = vmatprep.subr.bf16.mxu0 %v1065
    %1557 = vmatpush2.bf16.msra.mxu0 %v1064
    %1558 = vmatprep.subr.bf16.mxu0 %v1063
    %1559 = vmatpush2.bf16.msra.mxu0 %v1062
    %1560 = vmatprep.subr.bf16.mxu0 %v1061
    %1561 = vmatpush2.bf16.msra.mxu0 %v1060
    %1562 = vmatprep.subr.bf16.mxu0 %v1059
    %1563 = vmatpush2.bf16.msra.mxu0 %v1058
    %1564 = vmatprep.subr.bf16.mxu0 %v1057
    %1565 = vmatpush2.bf16.msra.mxu0 %v1056
    %1566 = vmatprep.mubr.bf16.mxu0 %v1533
    %1567 = vmatmul.mubr.bf16.gmra.mxu0 %v1532
    %v1568 = vpop.f32.mrf.mxu0
    %v1569 = vadd.f32 %v279, %v1568
    %v1570 = vpop.f32.mrf.mxu0
    %v1571 = vadd.f32 %v283, %v1570
    %v1572 = vpop.f32.mrf.mxu0
    %v1573 = vpop.f32.mrf.mxu0
    %1574 = vdwg.mxu0
    %v1575 = vpack.c.bf16 %v1569, %v1569
    %v1576 = vpack.c.bf16 %v1571, %v1571
    %1577 = vmatprep.subr.bf16.mxu0 %v1258
    %1578 = vmatpush1.bf16.msra.mxu0 %v1257
    %1579 = vmatprep.subr.bf16.mxu0 %v1256
    %1580 = vmatpush1.bf16.msra.mxu0 %v1255
    %1581 = vmatprep.subr.bf16.mxu0 %v1254
    %1582 = vmatpush1.bf16.msra.mxu0 %v1253
    %1583 = vmatprep.subr.bf16.mxu0 %v1252
    %1584 = vmatpush1.bf16.msra.mxu0 %v1251
    %1585 = vmatprep.subr.bf16.mxu0 %v1250
    %1586 = vmatpush1.bf16.msra.mxu0 %v1249
    %1587 = vmatprep.subr.bf16.mxu0 %v1248
    %1588 = vmatpush1.bf16.msra.mxu0 %v1247
    %1589 = vmatprep.subr.bf16.mxu0 %v1246
    %1590 = vmatpush1.bf16.msra.mxu0 %v1245
    %1591 = vmatprep.subr.bf16.mxu0 %v1244
    %1592 = vmatpush1.bf16.msra.mxu0 %v1243
    %1593 = vmatprep.subr.bf16.mxu0 %v1274
    %1594 = vmatpush2.bf16.msra.mxu0 %v1273
    %1595 = vmatprep.subr.bf16.mxu0 %v1272
    %1596 = vmatpush2.bf16.msra.mxu0 %v1271
    %1597 = vmatprep.subr.bf16.mxu0 %v1270
    %1598 = vmatpush2.bf16.msra.mxu0 %v1269
    %1599 = vmatprep.subr.bf16.mxu0 %v1268
    %1600 = vmatpush2.bf16.msra.mxu0 %v1267
    %1601 = vmatprep.subr.bf16.mxu0 %v1266
    %1602 = vmatpush2.bf16.msra.mxu0 %v1265
    %1603 = vmatprep.subr.bf16.mxu0 %v1264
    %1604 = vmatpush2.bf16.msra.mxu0 %v1263
    %1605 = vmatprep.subr.bf16.mxu0 %v1262
    %1606 = vmatpush2.bf16.msra.mxu0 %v1261
    %1607 = vmatprep.subr.bf16.mxu0 %v1260
    %1608 = vmatpush2.bf16.msra.mxu0 %v1259
    %1609 = vmatprep.mubr.bf16.mxu0 %v1576
    %1610 = vmatmul.mubr.bf16.gmra.mxu0 %v1575
    %v1611 = vpop.f32.mrf.mxu0
    %v1612 = vadd.f32 0.0, %v1611
    %v1613 = vpop.f32.mrf.mxu0
    %v1614 = vadd.f32 0.0, %v1613
    %v1615 = vpop.f32.mrf.mxu0
    %v1616 = vpop.f32.mrf.mxu0
    %1617 = vdwg.mxu0
    %v1618 = vadd.f32 %v1485, %v1612
    %v1619 = vadd.f32 %v1486, %v1614
    %v1620 = vadd.f32 %v1618, %v291
    %v1621 = vadd.f32 %v1619, %v295
    %1622 = vst [vmem:[#allocation13] sm:$0xff] %v1620
    %1623 = vst [vmem:[#allocation13 + $0x8] sm:$0xff] %v1621
    // Predicated region
    $region62: #{tpu_custom_call.1} parent=1 // pred_check
      _
    $region63: #{tpu_custom_call.1} parent=1 // pred_check_branch
      %1625 = sbr.rel (0) target = $region65
    $region64: #{tpu_custom_call.1} parent=1 // pred_region
      %s1627 = ssub.s32 256, 256
      %1628 = vsyncadd [#allocation4], %s1627
      %s1630 = sshll.u32 [#allocation13], 4
      %s1631 = int_to_ptr.vmem [resolvable:$true] %s1630
      %1633 = dma.vmem_to_hbm [thread:$0]  %s1631, 256, %s9, [#allocation4]
    $region65: #{tpu_custom_call.1} parent=1 // pred_fallthru
      _
    // Predicated region
    $region66: #{tpu_custom_call.1} parent=1 // pred_check
      _
    $region67: #{tpu_custom_call.1} parent=1 // pred_check_branch
      %1635 = sbr.rel (0) target = $region69
    $region68: #{tpu_custom_call.1} parent=1 // pred_region
      %1636 = dma.done [#allocation4], 256
    $region69: #{tpu_custom_call.1} parent=1 // pred_fallthru
      _
    %1637 = vsyncpa [#allocation3], 1
    %1638 = vsyncpa [#allocation6], 1
    %1639 = vsyncpa [#allocation9], 1
    %1640 = vsyncpa [#allocation12], 1
    %1641 = vsyncpa [#allocation4], 1

</llo_original>
